<compile_context>
chip_gen: v7x
topology: tpu7x:2x2x1
jax: 0.10.0
libtpu: 0.0.40
codegen_flags: <defaults>
</compile_context>

<pallas_src>
import jax
import jax.numpy as jnp
from jax.experimental import pallas as pl
from jax.experimental.pallas import tpu as pltpu

BN_EPS = 1e-5

# 3x3 taps in HWIO order: t = ky*3 + kx  <->  offset (oy, ox) = (ky-1, kx-1)
_TAPS = [(dy - 1, dx - 1) for dy in range(3) for dx in range(3)]


# ----------------------------------------------------------------------------
# Fused kernel: conv3x3+BN+ReLU layers -> per-view min/max normalization
# ----------------------------------------------------------------------------
def make_fused_scorer_kernel(in_channels, channels, H, W, eps):
    P = H * W

    def kernel(x_ref, *refs):
        o_ref = refs[-1]
        wb_refs = refs[:-1]                   # (w1, b1, w2, b2, ...) in SMEM

        x = x_ref[...]                        # (Cin, V, P) f32
        V = x.shape[1]

        def shift3(a, off):
            # s[..., p] = a[..., p + off] if 0 <= p + off < P else 0
            if off == 0:
                return a
            C = a.shape[0]
            if off > 0:
                pad = jnp.zeros((C, V, off), jnp.float32)
                return jnp.concatenate([a[:, :, off:], pad], axis=2)
            pad = jnp.zeros((C, V, -off), jnp.float32)
            return jnp.concatenate([pad, a[:, :, :P + off]], axis=2)

        # Column-validity masks (left/right image boundary); top/bottom row
        # boundaries are handled by the zero fill of shift3.  Shared by all
        # layers and channels.
        xc = jax.lax.broadcasted_iota(jnp.int32, (1, 1, P), 2) % W
        col_ok = {ox: (xc + ox >= 0) & (xc + ox < W) for ox in (-1, 1)}

        cur = x                               # (cin, V, P)
        cin = in_channels
        for li, cout in enumerate(channels):
            w_ref = wb_refs[2 * li]           # flat (9*cin*cout,) f32, SMEM
            b_ref = wb_refs[2 * li + 1]       # (cout,) f32, SMEM
            accs = [None] * cout
            for t, (oy, ox) in enumerate(_TAPS):
                off = oy * W + ox
                s = shift3(cur, off)          # ONE shift per tap for all cin
                if ox != 0:
                    s = jnp.where(col_ok[ox], s, 0.0)
                for ci in range(cin):
                    sc = s[ci]                # (V, P) leading-axis pick (free)
                    for co in range(cout):
                        widx = (t * cin + ci) * cout + co
                        term = w_ref[widx] * sc
                        accs[co] = term if accs[co] is None else accs[co] + term
            outs = [jnp.maximum(accs[co] + b_ref[co], 0.0)
                    for co in range(cout)]
            cur = jnp.stack(outs, axis=0)     # (cout, V, P)
            cin = cout

        # Final layer has a single channel -> fused per-view min/max
        # normalization as the epilogue (cross-lane reduction over H*W).
        y = cur[0]                            # (V, P)
        mn = jnp.min(y, axis=1, keepdims=True)
        mx = jnp.max(y, axis=1, keepdims=True)
        o_ref[...] = (y - mn) / (mx - mn + eps)

    return kernel


# ----------------------------------------------------------------------------
# ContextScorer forward (Pallas)
# ----------------------------------------------------------------------------
def context_scorer_forward(context, params, eps=1e-8):
    """context: (b, v, c, h, w) float32 (PyTorch NCHW-per-view layout).

    Returns (score_maps (v, h, w), alphas (v,)) matching the PyTorch module
    (which, via .squeeze(), assumes b == 1 and a final channel count of 1)."""
    b, v, c, h, w = context.shape
    assert b == 1, "PyTorch forward's .squeeze()/view(v,-1) implies b == 1"
    channels = [wl.shape[-1] for (wl, _) in params["layers"]]
    assert channels[-1] == 1, "last conv layer must emit a single channel"

    P = h * w
    # (1, v, c, h, w) -> (c, v, h*w): channels leading (free per-channel
    # slicing in-kernel), (views, pixels) on the (sublane, lane) axes.
    # Pure layout plumbing in the wrapper.
    x = context.astype(jnp.float32).reshape(v, c, P).transpose(1, 0, 2)

    in_specs = [pl.BlockSpec((c, v, P), lambda i: (0, 0, 0))]
    args = [x]
    for (w_hwio, bias) in params["layers"]:
        in_specs.append(pl.BlockSpec(memory_space=pltpu.MemorySpace.SMEM))
        in_specs.append(pl.BlockSpec(memory_space=pltpu.MemorySpace.SMEM))
        args.append(w_hwio.astype(jnp.float32).reshape(-1))   # (9*cin*cout,)
        args.append(bias.astype(jnp.float32).reshape(-1))     # (cout,)

    kernel = make_fused_scorer_kernel(c, channels, h, w, eps)
    score = pl.pallas_call(
        kernel,
        out_shape=jax.ShapeDtypeStruct((v, P), jnp.float32),
        grid=(1,),
        in_specs=in_specs,
        out_specs=pl.BlockSpec((v, P), lambda i: (0, 0)),
        compiler_params=pltpu.CompilerParams(
            dimension_semantics=("arbitrary",)),
    )(*args)
    score_maps = score.reshape(v, h, w)

    # alphas depend only on the betas parameter (8-element softmax); keep it in
    # plain JAX instead of paying a whole kernel launch for ~20 flops.
    betas_m = params["betas"].reshape(v, -1).mean(axis=-1)
    alphas = jax.nn.softmax(betas_m, axis=0)
    return score_maps, alphas


# ----------------------------------------------------------------------------
# Deterministic parameter init (shapes from ContextScorer.__init__) + BN fold
# ----------------------------------------------------------------------------
def init_params(key, channels, max_num_view, in_channels=3):
    params = {"layers": []}
    for out_channels in channels:
        key, kw, kb, kg, kbt, km, kv = jax.random.split(key, 7)
        # Conv2d weight (Cout, Cin, 3, 3), bias (Cout,)
        w_oihw = 0.1 * jax.random.normal(
            kw, (out_channels, in_channels, 3, 3), jnp.float32)
        conv_b = 0.1 * jax.random.normal(kb, (out_channels,), jnp.float32)
        # BatchNorm2d params + (synthetic) running stats, eval mode
        gamma = 1.0 + 0.1 * jax.random.normal(kg, (out_channels,), jnp.float32)
        beta = 0.1 * jax.random.normal(kbt, (out_channels,), jnp.float32)
        r_mean = 0.1 * jax.random.normal(km, (out_channels,), jnp.float32)
        r_var = 0.5 + jnp.abs(jax.random.normal(kv, (out_channels,),
                                                jnp.float32))
        # Fold BN into conv: y = gamma*(conv(x)+b - mean)/sqrt(var+eps) + beta
        scale = gamma / jnp.sqrt(r_var + BN_EPS)                 # (Cout,)
        w_fold = w_oihw * scale[:, None, None, None]
        b_fold = (conv_b - r_mean) * scale + beta
        w_hwio = jnp.transpose(w_fold, (2, 3, 1, 0))             # (3,3,Cin,Cout)
        params["layers"].append((w_hwio, b_fold))
        in_channels = out_channels
    key, kbeta = jax.random.split(key)
    # nn.Parameter(torch.ones(max_num_view)) -> deterministic non-trivial init
    params["betas"] = jnp.ones((max_num_view,), jnp.float32) + \
        0.1 * jax.random.normal(kbeta, (max_num_view,), jnp.float32)
    return params


# ----------------------------------------------------------------------------
# Pure-JAX reference (for correctness check)
# ----------------------------------------------------------------------------
def reference_forward(context, params, eps=1e-8):
    b, v, c, h, w = context.shape
    x = context.reshape(b * v, c, h, w).transpose(0, 2, 3, 1)
    for w_hwio, bias in params["layers"]:
        x = jax.lax.conv_general_dilated(
            x, w_hwio, window_strides=(1, 1), padding="SAME",
            dimension_numbers=("NHWC", "HWIO", "NHWC"))
        x = jnp.maximum(x + bias, 0.0)
    score = x.reshape(v, h, w)
    mn = score.reshape(v, -1).min(axis=1).reshape(v, 1, 1)
    mx = score.reshape(v, -1).max(axis=1).reshape(v, 1, 1)
    betas_m = params["betas"].reshape(v, -1).mean(axis=-1)
    alphas = jax.nn.softmax(betas_m, axis=0)
    return (score - mn) / (mx - mn + eps), alphas


# ----------------------------------------------------------------------------
# Main
# ----------------------------------------------------------------------------
if __name__ == "__main__":
    key = jax.random.PRNGKey(0)
    b, v, c, h, w = 1, 8, 3, 16, 16
    channels = [4, 1]          # num_layers = 2, last layer has 1 channel
    max_num_view = v

    key, kp, kc = jax.random.split(key, 3)
    params = init_params(kp, channels, max_num_view, in_channels=c)
    context = jax.random.normal(kc, (b, v, c, h, w), jnp.float32)

    score_maps, alphas = context_scorer_forward(context, params)
    jax.block_until_ready((score_maps, alphas))

    ref_scores, ref_alphas = reference_forward(context, params)
    assert score_maps.shape == (v, h, w) and alphas.shape == (v,)
    assert jnp.allclose(score_maps, ref_scores, atol=1e-4, rtol=1e-4), \
        "score_maps mismatch vs reference"
    assert jnp.allclose(alphas, ref_alphas, atol=1e-5, rtol=1e-5), \
        "alphas mismatch vs reference"

    print("KERNEL_OK")
</pallas_src>

<mosaic_0001>
module attributes {stable_mosaic.version = 11 : i64} {
  func.func @kernel(%arg0: i32, %arg1: memref<3x8x256xf32, #tpu.memory_space<vmem>>, %arg2: memref<108xf32, #tpu.memory_space<smem>>, %arg3: memref<4xf32, #tpu.memory_space<smem>>, %arg4: memref<36xf32, #tpu.memory_space<smem>>, %arg5: memref<1xf32, #tpu.memory_space<smem>>, %arg6: memref<8x256xf32, #tpu.memory_space<vmem>>) attributes {dimension_semantics = [#tpu.dimension_semantics<arbitrary>], iteration_bounds = array<i64: 1>, scalar_prefetch = 0 : i64, scratch_operands = 0 : i64, tpu.core_type = #tpu.core_type<tc>, window_params = [{pipeline_mode = #tpu.pipeline_mode<synchronous>, transform_indices = @transform_0, window_bounds = array<i64: 3, 8, 256>}, {transform_indices = @transform_1, window_bounds = array<i64: 108>}, {transform_indices = @transform_2, window_bounds = array<i64: 4>}, {transform_indices = @transform_3, window_bounds = array<i64: 36>}, {transform_indices = @transform_4, window_bounds = array<i64: 1>}, {pipeline_mode = #tpu.pipeline_mode<synchronous>, transform_indices = @transform_5, window_bounds = array<i64: 8, 256>}]} {
    %c0 = arith.constant 0 : index
    %c0_0 = arith.constant 0 : index
    %c0_1 = arith.constant 0 : index
    %0 = vector.load %arg1[%c0, %c0_0, %c0_1] : memref<3x8x256xf32, #tpu.memory_space<vmem>>, vector<3x8x256xf32>
    %1 = tpu.iota {dimensions = array<i32: 2>} : vector<1x1x256xi32>
    %c16_i32 = arith.constant 16 : i32
    %c0_i32 = arith.constant 0 : i32
    %2 = arith.cmpi eq, %c16_i32, %c0_i32 : i32
    %c1_i32 = arith.constant 1 : i32
    %3 = arith.select %2, %c1_i32, %c16_i32 : i32
    %4 = vector.broadcast %3 : i32 to vector<1x1x256xi32>
    %5 = arith.remsi %1, %4 : vector<1x1x256xi32>
    %c0_i32_2 = arith.constant 0 : i32
    %6 = vector.broadcast %c0_i32_2 : i32 to vector<1x1x256xi32>
    %7 = arith.cmpi ne, %5, %6 : vector<1x1x256xi32>
    %c0_i32_3 = arith.constant 0 : i32
    %8 = vector.broadcast %c0_i32_3 : i32 to vector<1x1x256xi32>
    %9 = arith.cmpi slt, %5, %8 : vector<1x1x256xi32>
    %c0_i32_4 = arith.constant 0 : i32
    %10 = arith.cmpi slt, %3, %c0_i32_4 : i32
    %11 = vector.broadcast %10 : i1 to vector<1x1x256xi1>
    %12 = vector.broadcast %11 : vector<1x1x256xi1> to vector<1x1x256xi1>
    %13 = arith.xori %9, %12 : vector<1x1x256xi1>
    %14 = arith.andi %13, %7 : vector<1x1x256xi1>
    %15 = vector.broadcast %3 : i32 to vector<1x1x256xi32>
    %16 = arith.addi %5, %15 : vector<1x1x256xi32>
    %17 = arith.select %14, %16, %5 : vector<1x1x256xi1>, vector<1x1x256xi32>
    %c-1_i32 = arith.constant -1 : i32
    %18 = vector.broadcast %c-1_i32 : i32 to vector<1x1x256xi32>
    %19 = arith.addi %17, %18 : vector<1x1x256xi32>
    %c0_i32_5 = arith.constant 0 : i32
    %20 = vector.broadcast %c0_i32_5 : i32 to vector<1x1x256xi32>
    %21 = arith.cmpi sge, %19, %20 : vector<1x1x256xi32>
    %c-1_i32_6 = arith.constant -1 : i32
    %22 = vector.broadcast %c-1_i32_6 : i32 to vector<1x1x256xi32>
    %23 = arith.addi %17, %22 : vector<1x1x256xi32>
    %c16_i32_7 = arith.constant 16 : i32
    %24 = vector.broadcast %c16_i32_7 : i32 to vector<1x1x256xi32>
    %25 = arith.cmpi slt, %23, %24 : vector<1x1x256xi32>
    %26 = arith.andi %21, %25 : vector<1x1x256xi1>
    %c1_i32_8 = arith.constant 1 : i32
    %27 = vector.broadcast %c1_i32_8 : i32 to vector<1x1x256xi32>
    %28 = arith.addi %17, %27 : vector<1x1x256xi32>
    %c0_i32_9 = arith.constant 0 : i32
    %29 = vector.broadcast %c0_i32_9 : i32 to vector<1x1x256xi32>
    %30 = arith.cmpi sge, %28, %29 : vector<1x1x256xi32>
    %c1_i32_10 = arith.constant 1 : i32
    %31 = vector.broadcast %c1_i32_10 : i32 to vector<1x1x256xi32>
    %32 = arith.addi %17, %31 : vector<1x1x256xi32>
    %c16_i32_11 = arith.constant 16 : i32
    %33 = vector.broadcast %c16_i32_11 : i32 to vector<1x1x256xi32>
    %34 = arith.cmpi slt, %32, %33 : vector<1x1x256xi32>
    %35 = arith.andi %30, %34 : vector<1x1x256xi1>
    %cst = arith.constant 0.000000e+00 : f32
    %36 = vector.broadcast %cst : f32 to vector<3x8x17xf32>
    %37 = vector.extract_strided_slice %0 {offsets = [0, 0, 0], sizes = [3, 8, 239], strides = [1, 1, 1]} : vector<3x8x256xf32> to vector<3x8x239xf32>
    %38 = tpu.concatenate %36, %37 in 2 : vector<3x8x17xf32>, vector<3x8x239xf32> -> vector<3x8x256xf32>
    %cst_12 = arith.constant 0.000000e+00 : f32
    %39 = vector.shape_cast %26 : vector<1x1x256xi1> to vector<1x1x256xi1>
    %40 = vector.broadcast %39 : vector<1x1x256xi1> to vector<3x8x256xi1>
    %41 = vector.broadcast %cst_12 : f32 to vector<3x8x256xf32>
    %42 = arith.select %40, %38, %41 : vector<3x8x256xi1>, vector<3x8x256xf32>
    %43 = vector.extract_strided_slice %42 {offsets = [0, 0, 0], sizes = [1, 8, 256], strides = [1, 1, 1]} : vector<3x8x256xf32> to vector<1x8x256xf32>
    %44 = vector.shape_cast %43 : vector<1x8x256xf32> to vector<8x256xf32>
    %c0_13 = arith.constant 0 : index
    %45 = memref.load %arg2[%c0_13] : memref<108xf32, #tpu.memory_space<smem>>
    %46 = vector.broadcast %45 : f32 to vector<8x256xf32>
    %47 = arith.mulf %46, %44 : vector<8x256xf32>
    %c1 = arith.constant 1 : index
    %48 = memref.load %arg2[%c1] : memref<108xf32, #tpu.memory_space<smem>>
    %49 = vector.broadcast %48 : f32 to vector<8x256xf32>
    %50 = arith.mulf %49, %44 : vector<8x256xf32>
    %c2 = arith.constant 2 : index
    %51 = memref.load %arg2[%c2] : memref<108xf32, #tpu.memory_space<smem>>
    %52 = vector.broadcast %51 : f32 to vector<8x256xf32>
    %53 = arith.mulf %52, %44 : vector<8x256xf32>
    %c3 = arith.constant 3 : index
    %54 = memref.load %arg2[%c3] : memref<108xf32, #tpu.memory_space<smem>>
    %55 = vector.broadcast %54 : f32 to vector<8x256xf32>
    %56 = arith.mulf %55, %44 : vector<8x256xf32>
    %57 = vector.extract_strided_slice %42 {offsets = [1, 0, 0], sizes = [1, 8, 256], strides = [1, 1, 1]} : vector<3x8x256xf32> to vector<1x8x256xf32>
    %58 = vector.shape_cast %57 : vector<1x8x256xf32> to vector<8x256xf32>
    %c4 = arith.constant 4 : index
    %59 = memref.load %arg2[%c4] : memref<108xf32, #tpu.memory_space<smem>>
    %60 = vector.broadcast %59 : f32 to vector<8x256xf32>
    %61 = arith.mulf %60, %58 : vector<8x256xf32>
    %62 = arith.addf %47, %61 : vector<8x256xf32>
    %c5 = arith.constant 5 : index
    %63 = memref.load %arg2[%c5] : memref<108xf32, #tpu.memory_space<smem>>
    %64 = vector.broadcast %63 : f32 to vector<8x256xf32>
    %65 = arith.mulf %64, %58 : vector<8x256xf32>
    %66 = arith.addf %50, %65 : vector<8x256xf32>
    %c6 = arith.constant 6 : index
    %67 = memref.load %arg2[%c6] : memref<108xf32, #tpu.memory_space<smem>>
    %68 = vector.broadcast %67 : f32 to vector<8x256xf32>
    %69 = arith.mulf %68, %58 : vector<8x256xf32>
    %70 = arith.addf %53, %69 : vector<8x256xf32>
    %c7 = arith.constant 7 : index
    %71 = memref.load %arg2[%c7] : memref<108xf32, #tpu.memory_space<smem>>
    %72 = vector.broadcast %71 : f32 to vector<8x256xf32>
    %73 = arith.mulf %72, %58 : vector<8x256xf32>
    %74 = arith.addf %56, %73 : vector<8x256xf32>
    %75 = vector.extract_strided_slice %42 {offsets = [2, 0, 0], sizes = [1, 8, 256], strides = [1, 1, 1]} : vector<3x8x256xf32> to vector<1x8x256xf32>
    %76 = vector.shape_cast %75 : vector<1x8x256xf32> to vector<8x256xf32>
    %c8 = arith.constant 8 : index
    %77 = memref.load %arg2[%c8] : memref<108xf32, #tpu.memory_space<smem>>
    %78 = vector.broadcast %77 : f32 to vector<8x256xf32>
    %79 = arith.mulf %78, %76 : vector<8x256xf32>
    %80 = arith.addf %62, %79 : vector<8x256xf32>
    %c9 = arith.constant 9 : index
    %81 = memref.load %arg2[%c9] : memref<108xf32, #tpu.memory_space<smem>>
    %82 = vector.broadcast %81 : f32 to vector<8x256xf32>
    %83 = arith.mulf %82, %76 : vector<8x256xf32>
    %84 = arith.addf %66, %83 : vector<8x256xf32>
    %c10 = arith.constant 10 : index
    %85 = memref.load %arg2[%c10] : memref<108xf32, #tpu.memory_space<smem>>
    %86 = vector.broadcast %85 : f32 to vector<8x256xf32>
    %87 = arith.mulf %86, %76 : vector<8x256xf32>
    %88 = arith.addf %70, %87 : vector<8x256xf32>
    %c11 = arith.constant 11 : index
    %89 = memref.load %arg2[%c11] : memref<108xf32, #tpu.memory_space<smem>>
    %90 = vector.broadcast %89 : f32 to vector<8x256xf32>
    %91 = arith.mulf %90, %76 : vector<8x256xf32>
    %92 = arith.addf %74, %91 : vector<8x256xf32>
    %cst_14 = arith.constant 0.000000e+00 : f32
    %93 = vector.broadcast %cst_14 : f32 to vector<3x8x16xf32>
    %94 = vector.extract_strided_slice %0 {offsets = [0, 0, 0], sizes = [3, 8, 240], strides = [1, 1, 1]} : vector<3x8x256xf32> to vector<3x8x240xf32>
    %95 = tpu.concatenate %93, %94 in 2 : vector<3x8x16xf32>, vector<3x8x240xf32> -> vector<3x8x256xf32>
    %96 = vector.extract_strided_slice %95 {offsets = [0, 0, 0], sizes = [1, 8, 256], strides = [1, 1, 1]} : vector<3x8x256xf32> to vector<1x8x256xf32>
    %97 = vector.shape_cast %96 : vector<1x8x256xf32> to vector<8x256xf32>
    %c12 = arith.constant 12 : index
    %98 = memref.load %arg2[%c12] : memref<108xf32, #tpu.memory_space<smem>>
    %99 = vector.broadcast %98 : f32 to vector<8x256xf32>
    %100 = arith.mulf %99, %97 : vector<8x256xf32>
    %101 = arith.addf %80, %100 : vector<8x256xf32>
    %c13 = arith.constant 13 : index
    %102 = memref.load %arg2[%c13] : memref<108xf32, #tpu.memory_space<smem>>
    %103 = vector.broadcast %102 : f32 to vector<8x256xf32>
    %104 = arith.mulf %103, %97 : vector<8x256xf32>
    %105 = arith.addf %84, %104 : vector<8x256xf32>
    %c14 = arith.constant 14 : index
    %106 = memref.load %arg2[%c14] : memref<108xf32, #tpu.memory_space<smem>>
    %107 = vector.broadcast %106 : f32 to vector<8x256xf32>
    %108 = arith.mulf %107, %97 : vector<8x256xf32>
    %109 = arith.addf %88, %108 : vector<8x256xf32>
    %c15 = arith.constant 15 : index
    %110 = memref.load %arg2[%c15] : memref<108xf32, #tpu.memory_space<smem>>
    %111 = vector.broadcast %110 : f32 to vector<8x256xf32>
    %112 = arith.mulf %111, %97 : vector<8x256xf32>
    %113 = arith.addf %92, %112 : vector<8x256xf32>
    %114 = vector.extract_strided_slice %95 {offsets = [1, 0, 0], sizes = [1, 8, 256], strides = [1, 1, 1]} : vector<3x8x256xf32> to vector<1x8x256xf32>
    %115 = vector.shape_cast %114 : vector<1x8x256xf32> to vector<8x256xf32>
    %c16 = arith.constant 16 : index
    %116 = memref.load %arg2[%c16] : memref<108xf32, #tpu.memory_space<smem>>
    %117 = vector.broadcast %116 : f32 to vector<8x256xf32>
    %118 = arith.mulf %117, %115 : vector<8x256xf32>
    %119 = arith.addf %101, %118 : vector<8x256xf32>
    %c17 = arith.constant 17 : index
    %120 = memref.load %arg2[%c17] : memref<108xf32, #tpu.memory_space<smem>>
    %121 = vector.broadcast %120 : f32 to vector<8x256xf32>
    %122 = arith.mulf %121, %115 : vector<8x256xf32>
    %123 = arith.addf %105, %122 : vector<8x256xf32>
    %c18 = arith.constant 18 : index
    %124 = memref.load %arg2[%c18] : memref<108xf32, #tpu.memory_space<smem>>
    %125 = vector.broadcast %124 : f32 to vector<8x256xf32>
    %126 = arith.mulf %125, %115 : vector<8x256xf32>
    %127 = arith.addf %109, %126 : vector<8x256xf32>
    %c19 = arith.constant 19 : index
    %128 = memref.load %arg2[%c19] : memref<108xf32, #tpu.memory_space<smem>>
    %129 = vector.broadcast %128 : f32 to vector<8x256xf32>
    %130 = arith.mulf %129, %115 : vector<8x256xf32>
    %131 = arith.addf %113, %130 : vector<8x256xf32>
    %132 = vector.extract_strided_slice %95 {offsets = [2, 0, 0], sizes = [1, 8, 256], strides = [1, 1, 1]} : vector<3x8x256xf32> to vector<1x8x256xf32>
    %133 = vector.shape_cast %132 : vector<1x8x256xf32> to vector<8x256xf32>
    %c20 = arith.constant 20 : index
    %134 = memref.load %arg2[%c20] : memref<108xf32, #tpu.memory_space<smem>>
    %135 = vector.broadcast %134 : f32 to vector<8x256xf32>
    %136 = arith.mulf %135, %133 : vector<8x256xf32>
    %137 = arith.addf %119, %136 : vector<8x256xf32>
    %c21 = arith.constant 21 : index
    %138 = memref.load %arg2[%c21] : memref<108xf32, #tpu.memory_space<smem>>
    %139 = vector.broadcast %138 : f32 to vector<8x256xf32>
    %140 = arith.mulf %139, %133 : vector<8x256xf32>
    %141 = arith.addf %123, %140 : vector<8x256xf32>
    %c22 = arith.constant 22 : index
    %142 = memref.load %arg2[%c22] : memref<108xf32, #tpu.memory_space<smem>>
    %143 = vector.broadcast %142 : f32 to vector<8x256xf32>
    %144 = arith.mulf %143, %133 : vector<8x256xf32>
    %145 = arith.addf %127, %144 : vector<8x256xf32>
    %c23 = arith.constant 23 : index
    %146 = memref.load %arg2[%c23] : memref<108xf32, #tpu.memory_space<smem>>
    %147 = vector.broadcast %146 : f32 to vector<8x256xf32>
    %148 = arith.mulf %147, %133 : vector<8x256xf32>
    %149 = arith.addf %131, %148 : vector<8x256xf32>
    %cst_15 = arith.constant 0.000000e+00 : f32
    %150 = vector.broadcast %cst_15 : f32 to vector<3x8x15xf32>
    %151 = vector.extract_strided_slice %0 {offsets = [0, 0, 0], sizes = [3, 8, 241], strides = [1, 1, 1]} : vector<3x8x256xf32> to vector<3x8x241xf32>
    %152 = tpu.concatenate %150, %151 in 2 : vector<3x8x15xf32>, vector<3x8x241xf32> -> vector<3x8x256xf32>
    %cst_16 = arith.constant 0.000000e+00 : f32
    %153 = vector.shape_cast %35 : vector<1x1x256xi1> to vector<1x1x256xi1>
    %154 = vector.broadcast %153 : vector<1x1x256xi1> to vector<3x8x256xi1>
    %155 = vector.broadcast %cst_16 : f32 to vector<3x8x256xf32>
    %156 = arith.select %154, %152, %155 : vector<3x8x256xi1>, vector<3x8x256xf32>
    %157 = vector.extract_strided_slice %156 {offsets = [0, 0, 0], sizes = [1, 8, 256], strides = [1, 1, 1]} : vector<3x8x256xf32> to vector<1x8x256xf32>
    %158 = vector.shape_cast %157 : vector<1x8x256xf32> to vector<8x256xf32>
    %c24 = arith.constant 24 : index
    %159 = memref.load %arg2[%c24] : memref<108xf32, #tpu.memory_space<smem>>
    %160 = vector.broadcast %159 : f32 to vector<8x256xf32>
    %161 = arith.mulf %160, %158 : vector<8x256xf32>
    %162 = arith.addf %137, %161 : vector<8x256xf32>
    %c25 = arith.constant 25 : index
    %163 = memref.load %arg2[%c25] : memref<108xf32, #tpu.memory_space<smem>>
    %164 = vector.broadcast %163 : f32 to vector<8x256xf32>
    %165 = arith.mulf %164, %158 : vector<8x256xf32>
    %166 = arith.addf %141, %165 : vector<8x256xf32>
    %c26 = arith.constant 26 : index
    %167 = memref.load %arg2[%c26] : memref<108xf32, #tpu.memory_space<smem>>
    %168 = vector.broadcast %167 : f32 to vector<8x256xf32>
    %169 = arith.mulf %168, %158 : vector<8x256xf32>
    %170 = arith.addf %145, %169 : vector<8x256xf32>
    %c27 = arith.constant 27 : index
    %171 = memref.load %arg2[%c27] : memref<108xf32, #tpu.memory_space<smem>>
    %172 = vector.broadcast %171 : f32 to vector<8x256xf32>
    %173 = arith.mulf %172, %158 : vector<8x256xf32>
    %174 = arith.addf %149, %173 : vector<8x256xf32>
    %175 = vector.extract_strided_slice %156 {offsets = [1, 0, 0], sizes = [1, 8, 256], strides = [1, 1, 1]} : vector<3x8x256xf32> to vector<1x8x256xf32>
    %176 = vector.shape_cast %175 : vector<1x8x256xf32> to vector<8x256xf32>
    %c28 = arith.constant 28 : index
    %177 = memref.load %arg2[%c28] : memref<108xf32, #tpu.memory_space<smem>>
    %178 = vector.broadcast %177 : f32 to vector<8x256xf32>
    %179 = arith.mulf %178, %176 : vector<8x256xf32>
    %180 = arith.addf %162, %179 : vector<8x256xf32>
    %c29 = arith.constant 29 : index
    %181 = memref.load %arg2[%c29] : memref<108xf32, #tpu.memory_space<smem>>
    %182 = vector.broadcast %181 : f32 to vector<8x256xf32>
    %183 = arith.mulf %182, %176 : vector<8x256xf32>
    %184 = arith.addf %166, %183 : vector<8x256xf32>
    %c30 = arith.constant 30 : index
    %185 = memref.load %arg2[%c30] : memref<108xf32, #tpu.memory_space<smem>>
    %186 = vector.broadcast %185 : f32 to vector<8x256xf32>
    %187 = arith.mulf %186, %176 : vector<8x256xf32>
    %188 = arith.addf %170, %187 : vector<8x256xf32>
    %c31 = arith.constant 31 : index
    %189 = memref.load %arg2[%c31] : memref<108xf32, #tpu.memory_space<smem>>
    %190 = vector.broadcast %189 : f32 to vector<8x256xf32>
    %191 = arith.mulf %190, %176 : vector<8x256xf32>
    %192 = arith.addf %174, %191 : vector<8x256xf32>
    %193 = vector.extract_strided_slice %156 {offsets = [2, 0, 0], sizes = [1, 8, 256], strides = [1, 1, 1]} : vector<3x8x256xf32> to vector<1x8x256xf32>
    %194 = vector.shape_cast %193 : vector<1x8x256xf32> to vector<8x256xf32>
    %c32 = arith.constant 32 : index
    %195 = memref.load %arg2[%c32] : memref<108xf32, #tpu.memory_space<smem>>
    %196 = vector.broadcast %195 : f32 to vector<8x256xf32>
    %197 = arith.mulf %196, %194 : vector<8x256xf32>
    %198 = arith.addf %180, %197 : vector<8x256xf32>
    %c33 = arith.constant 33 : index
    %199 = memref.load %arg2[%c33] : memref<108xf32, #tpu.memory_space<smem>>
    %200 = vector.broadcast %199 : f32 to vector<8x256xf32>
    %201 = arith.mulf %200, %194 : vector<8x256xf32>
    %202 = arith.addf %184, %201 : vector<8x256xf32>
    %c34 = arith.constant 34 : index
    %203 = memref.load %arg2[%c34] : memref<108xf32, #tpu.memory_space<smem>>
    %204 = vector.broadcast %203 : f32 to vector<8x256xf32>
    %205 = arith.mulf %204, %194 : vector<8x256xf32>
    %206 = arith.addf %188, %205 : vector<8x256xf32>
    %c35 = arith.constant 35 : index
    %207 = memref.load %arg2[%c35] : memref<108xf32, #tpu.memory_space<smem>>
    %208 = vector.broadcast %207 : f32 to vector<8x256xf32>
    %209 = arith.mulf %208, %194 : vector<8x256xf32>
    %210 = arith.addf %192, %209 : vector<8x256xf32>
    %cst_17 = arith.constant 0.000000e+00 : f32
    %211 = vector.broadcast %cst_17 : f32 to vector<3x8x1xf32>
    %212 = vector.extract_strided_slice %0 {offsets = [0, 0, 0], sizes = [3, 8, 255], strides = [1, 1, 1]} : vector<3x8x256xf32> to vector<3x8x255xf32>
    %213 = tpu.concatenate %211, %212 in 2 : vector<3x8x1xf32>, vector<3x8x255xf32> -> vector<3x8x256xf32>
    %cst_18 = arith.constant 0.000000e+00 : f32
    %214 = vector.shape_cast %26 : vector<1x1x256xi1> to vector<1x1x256xi1>
    %215 = vector.broadcast %214 : vector<1x1x256xi1> to vector<3x8x256xi1>
    %216 = vector.broadcast %cst_18 : f32 to vector<3x8x256xf32>
    %217 = arith.select %215, %213, %216 : vector<3x8x256xi1>, vector<3x8x256xf32>
    %218 = vector.extract_strided_slice %217 {offsets = [0, 0, 0], sizes = [1, 8, 256], strides = [1, 1, 1]} : vector<3x8x256xf32> to vector<1x8x256xf32>
    %219 = vector.shape_cast %218 : vector<1x8x256xf32> to vector<8x256xf32>
    %c36 = arith.constant 36 : index
    %220 = memref.load %arg2[%c36] : memref<108xf32, #tpu.memory_space<smem>>
    %221 = vector.broadcast %220 : f32 to vector<8x256xf32>
    %222 = arith.mulf %221, %219 : vector<8x256xf32>
    %223 = arith.addf %198, %222 : vector<8x256xf32>
    %c37 = arith.constant 37 : index
    %224 = memref.load %arg2[%c37] : memref<108xf32, #tpu.memory_space<smem>>
    %225 = vector.broadcast %224 : f32 to vector<8x256xf32>
    %226 = arith.mulf %225, %219 : vector<8x256xf32>
    %227 = arith.addf %202, %226 : vector<8x256xf32>
    %c38 = arith.constant 38 : index
    %228 = memref.load %arg2[%c38] : memref<108xf32, #tpu.memory_space<smem>>
    %229 = vector.broadcast %228 : f32 to vector<8x256xf32>
    %230 = arith.mulf %229, %219 : vector<8x256xf32>
    %231 = arith.addf %206, %230 : vector<8x256xf32>
    %c39 = arith.constant 39 : index
    %232 = memref.load %arg2[%c39] : memref<108xf32, #tpu.memory_space<smem>>
    %233 = vector.broadcast %232 : f32 to vector<8x256xf32>
    %234 = arith.mulf %233, %219 : vector<8x256xf32>
    %235 = arith.addf %210, %234 : vector<8x256xf32>
    %236 = vector.extract_strided_slice %217 {offsets = [1, 0, 0], sizes = [1, 8, 256], strides = [1, 1, 1]} : vector<3x8x256xf32> to vector<1x8x256xf32>
    %237 = vector.shape_cast %236 : vector<1x8x256xf32> to vector<8x256xf32>
    %c40 = arith.constant 40 : index
    %238 = memref.load %arg2[%c40] : memref<108xf32, #tpu.memory_space<smem>>
    %239 = vector.broadcast %238 : f32 to vector<8x256xf32>
    %240 = arith.mulf %239, %237 : vector<8x256xf32>
    %241 = arith.addf %223, %240 : vector<8x256xf32>
    %c41 = arith.constant 41 : index
    %242 = memref.load %arg2[%c41] : memref<108xf32, #tpu.memory_space<smem>>
    %243 = vector.broadcast %242 : f32 to vector<8x256xf32>
    %244 = arith.mulf %243, %237 : vector<8x256xf32>
    %245 = arith.addf %227, %244 : vector<8x256xf32>
    %c42 = arith.constant 42 : index
    %246 = memref.load %arg2[%c42] : memref<108xf32, #tpu.memory_space<smem>>
    %247 = vector.broadcast %246 : f32 to vector<8x256xf32>
    %248 = arith.mulf %247, %237 : vector<8x256xf32>
    %249 = arith.addf %231, %248 : vector<8x256xf32>
    %c43 = arith.constant 43 : index
    %250 = memref.load %arg2[%c43] : memref<108xf32, #tpu.memory_space<smem>>
    %251 = vector.broadcast %250 : f32 to vector<8x256xf32>
    %252 = arith.mulf %251, %237 : vector<8x256xf32>
    %253 = arith.addf %235, %252 : vector<8x256xf32>
    %254 = vector.extract_strided_slice %217 {offsets = [2, 0, 0], sizes = [1, 8, 256], strides = [1, 1, 1]} : vector<3x8x256xf32> to vector<1x8x256xf32>
    %255 = vector.shape_cast %254 : vector<1x8x256xf32> to vector<8x256xf32>
    %c44 = arith.constant 44 : index
    %256 = memref.load %arg2[%c44] : memref<108xf32, #tpu.memory_space<smem>>
    %257 = vector.broadcast %256 : f32 to vector<8x256xf32>
    %258 = arith.mulf %257, %255 : vector<8x256xf32>
    %259 = arith.addf %241, %258 : vector<8x256xf32>
    %c45 = arith.constant 45 : index
    %260 = memref.load %arg2[%c45] : memref<108xf32, #tpu.memory_space<smem>>
    %261 = vector.broadcast %260 : f32 to vector<8x256xf32>
    %262 = arith.mulf %261, %255 : vector<8x256xf32>
    %263 = arith.addf %245, %262 : vector<8x256xf32>
    %c46 = arith.constant 46 : index
    %264 = memref.load %arg2[%c46] : memref<108xf32, #tpu.memory_space<smem>>
    %265 = vector.broadcast %264 : f32 to vector<8x256xf32>
    %266 = arith.mulf %265, %255 : vector<8x256xf32>
    %267 = arith.addf %249, %266 : vector<8x256xf32>
    %c47 = arith.constant 47 : index
    %268 = memref.load %arg2[%c47] : memref<108xf32, #tpu.memory_space<smem>>
    %269 = vector.broadcast %268 : f32 to vector<8x256xf32>
    %270 = arith.mulf %269, %255 : vector<8x256xf32>
    %271 = arith.addf %253, %270 : vector<8x256xf32>
    %272 = vector.extract_strided_slice %0 {offsets = [0, 0, 0], sizes = [1, 8, 256], strides = [1, 1, 1]} : vector<3x8x256xf32> to vector<1x8x256xf32>
    %273 = vector.shape_cast %272 : vector<1x8x256xf32> to vector<8x256xf32>
    %c48 = arith.constant 48 : index
    %274 = memref.load %arg2[%c48] : memref<108xf32, #tpu.memory_space<smem>>
    %275 = vector.broadcast %274 : f32 to vector<8x256xf32>
    %276 = arith.mulf %275, %273 : vector<8x256xf32>
    %277 = arith.addf %259, %276 : vector<8x256xf32>
    %c49 = arith.constant 49 : index
    %278 = memref.load %arg2[%c49] : memref<108xf32, #tpu.memory_space<smem>>
    %279 = vector.broadcast %278 : f32 to vector<8x256xf32>
    %280 = arith.mulf %279, %273 : vector<8x256xf32>
    %281 = arith.addf %263, %280 : vector<8x256xf32>
    %c50 = arith.constant 50 : index
    %282 = memref.load %arg2[%c50] : memref<108xf32, #tpu.memory_space<smem>>
    %283 = vector.broadcast %282 : f32 to vector<8x256xf32>
    %284 = arith.mulf %283, %273 : vector<8x256xf32>
    %285 = arith.addf %267, %284 : vector<8x256xf32>
    %c51 = arith.constant 51 : index
    %286 = memref.load %arg2[%c51] : memref<108xf32, #tpu.memory_space<smem>>
    %287 = vector.broadcast %286 : f32 to vector<8x256xf32>
    %288 = arith.mulf %287, %273 : vector<8x256xf32>
    %289 = arith.addf %271, %288 : vector<8x256xf32>
    %290 = vector.extract_strided_slice %0 {offsets = [1, 0, 0], sizes = [1, 8, 256], strides = [1, 1, 1]} : vector<3x8x256xf32> to vector<1x8x256xf32>
    %291 = vector.shape_cast %290 : vector<1x8x256xf32> to vector<8x256xf32>
    %c52 = arith.constant 52 : index
    %292 = memref.load %arg2[%c52] : memref<108xf32, #tpu.memory_space<smem>>
    %293 = vector.broadcast %292 : f32 to vector<8x256xf32>
    %294 = arith.mulf %293, %291 : vector<8x256xf32>
    %295 = arith.addf %277, %294 : vector<8x256xf32>
    %c53 = arith.constant 53 : index
    %296 = memref.load %arg2[%c53] : memref<108xf32, #tpu.memory_space<smem>>
    %297 = vector.broadcast %296 : f32 to vector<8x256xf32>
    %298 = arith.mulf %297, %291 : vector<8x256xf32>
    %299 = arith.addf %281, %298 : vector<8x256xf32>
    %c54 = arith.constant 54 : index
    %300 = memref.load %arg2[%c54] : memref<108xf32, #tpu.memory_space<smem>>
    %301 = vector.broadcast %300 : f32 to vector<8x256xf32>
    %302 = arith.mulf %301, %291 : vector<8x256xf32>
    %303 = arith.addf %285, %302 : vector<8x256xf32>
    %c55 = arith.constant 55 : index
    %304 = memref.load %arg2[%c55] : memref<108xf32, #tpu.memory_space<smem>>
    %305 = vector.broadcast %304 : f32 to vector<8x256xf32>
    %306 = arith.mulf %305, %291 : vector<8x256xf32>
    %307 = arith.addf %289, %306 : vector<8x256xf32>
    %308 = vector.extract_strided_slice %0 {offsets = [2, 0, 0], sizes = [1, 8, 256], strides = [1, 1, 1]} : vector<3x8x256xf32> to vector<1x8x256xf32>
    %309 = vector.shape_cast %308 : vector<1x8x256xf32> to vector<8x256xf32>
    %c56 = arith.constant 56 : index
    %310 = memref.load %arg2[%c56] : memref<108xf32, #tpu.memory_space<smem>>
    %311 = vector.broadcast %310 : f32 to vector<8x256xf32>
    %312 = arith.mulf %311, %309 : vector<8x256xf32>
    %313 = arith.addf %295, %312 : vector<8x256xf32>
    %c57 = arith.constant 57 : index
    %314 = memref.load %arg2[%c57] : memref<108xf32, #tpu.memory_space<smem>>
    %315 = vector.broadcast %314 : f32 to vector<8x256xf32>
    %316 = arith.mulf %315, %309 : vector<8x256xf32>
    %317 = arith.addf %299, %316 : vector<8x256xf32>
    %c58 = arith.constant 58 : index
    %318 = memref.load %arg2[%c58] : memref<108xf32, #tpu.memory_space<smem>>
    %319 = vector.broadcast %318 : f32 to vector<8x256xf32>
    %320 = arith.mulf %319, %309 : vector<8x256xf32>
    %321 = arith.addf %303, %320 : vector<8x256xf32>
    %c59 = arith.constant 59 : index
    %322 = memref.load %arg2[%c59] : memref<108xf32, #tpu.memory_space<smem>>
    %323 = vector.broadcast %322 : f32 to vector<8x256xf32>
    %324 = arith.mulf %323, %309 : vector<8x256xf32>
    %325 = arith.addf %307, %324 : vector<8x256xf32>
    %cst_19 = arith.constant 0.000000e+00 : f32
    %326 = vector.broadcast %cst_19 : f32 to vector<3x8x1xf32>
    %327 = vector.extract_strided_slice %0 {offsets = [0, 0, 1], sizes = [3, 8, 255], strides = [1, 1, 1]} : vector<3x8x256xf32> to vector<3x8x255xf32>
    %328 = tpu.concatenate %327, %326 in 2 : vector<3x8x255xf32>, vector<3x8x1xf32> -> vector<3x8x256xf32>
    %cst_20 = arith.constant 0.000000e+00 : f32
    %329 = vector.shape_cast %35 : vector<1x1x256xi1> to vector<1x1x256xi1>
    %330 = vector.broadcast %329 : vector<1x1x256xi1> to vector<3x8x256xi1>
    %331 = vector.broadcast %cst_20 : f32 to vector<3x8x256xf32>
    %332 = arith.select %330, %328, %331 : vector<3x8x256xi1>, vector<3x8x256xf32>
    %333 = vector.extract_strided_slice %332 {offsets = [0, 0, 0], sizes = [1, 8, 256], strides = [1, 1, 1]} : vector<3x8x256xf32> to vector<1x8x256xf32>
    %334 = vector.shape_cast %333 : vector<1x8x256xf32> to vector<8x256xf32>
    %c60 = arith.constant 60 : index
    %335 = memref.load %arg2[%c60] : memref<108xf32, #tpu.memory_space<smem>>
    %336 = vector.broadcast %335 : f32 to vector<8x256xf32>
    %337 = arith.mulf %336, %334 : vector<8x256xf32>
    %338 = arith.addf %313, %337 : vector<8x256xf32>
    %c61 = arith.constant 61 : index
    %339 = memref.load %arg2[%c61] : memref<108xf32, #tpu.memory_space<smem>>
    %340 = vector.broadcast %339 : f32 to vector<8x256xf32>
    %341 = arith.mulf %340, %334 : vector<8x256xf32>
    %342 = arith.addf %317, %341 : vector<8x256xf32>
    %c62 = arith.constant 62 : index
    %343 = memref.load %arg2[%c62] : memref<108xf32, #tpu.memory_space<smem>>
    %344 = vector.broadcast %343 : f32 to vector<8x256xf32>
    %345 = arith.mulf %344, %334 : vector<8x256xf32>
    %346 = arith.addf %321, %345 : vector<8x256xf32>
    %c63 = arith.constant 63 : index
    %347 = memref.load %arg2[%c63] : memref<108xf32, #tpu.memory_space<smem>>
    %348 = vector.broadcast %347 : f32 to vector<8x256xf32>
    %349 = arith.mulf %348, %334 : vector<8x256xf32>
    %350 = arith.addf %325, %349 : vector<8x256xf32>
    %351 = vector.extract_strided_slice %332 {offsets = [1, 0, 0], sizes = [1, 8, 256], strides = [1, 1, 1]} : vector<3x8x256xf32> to vector<1x8x256xf32>
    %352 = vector.shape_cast %351 : vector<1x8x256xf32> to vector<8x256xf32>
    %c64 = arith.constant 64 : index
    %353 = memref.load %arg2[%c64] : memref<108xf32, #tpu.memory_space<smem>>
    %354 = vector.broadcast %353 : f32 to vector<8x256xf32>
    %355 = arith.mulf %354, %352 : vector<8x256xf32>
    %356 = arith.addf %338, %355 : vector<8x256xf32>
    %c65 = arith.constant 65 : index
    %357 = memref.load %arg2[%c65] : memref<108xf32, #tpu.memory_space<smem>>
    %358 = vector.broadcast %357 : f32 to vector<8x256xf32>
    %359 = arith.mulf %358, %352 : vector<8x256xf32>
    %360 = arith.addf %342, %359 : vector<8x256xf32>
    %c66 = arith.constant 66 : index
    %361 = memref.load %arg2[%c66] : memref<108xf32, #tpu.memory_space<smem>>
    %362 = vector.broadcast %361 : f32 to vector<8x256xf32>
    %363 = arith.mulf %362, %352 : vector<8x256xf32>
    %364 = arith.addf %346, %363 : vector<8x256xf32>
    %c67 = arith.constant 67 : index
    %365 = memref.load %arg2[%c67] : memref<108xf32, #tpu.memory_space<smem>>
    %366 = vector.broadcast %365 : f32 to vector<8x256xf32>
    %367 = arith.mulf %366, %352 : vector<8x256xf32>
    %368 = arith.addf %350, %367 : vector<8x256xf32>
    %369 = vector.extract_strided_slice %332 {offsets = [2, 0, 0], sizes = [1, 8, 256], strides = [1, 1, 1]} : vector<3x8x256xf32> to vector<1x8x256xf32>
    %370 = vector.shape_cast %369 : vector<1x8x256xf32> to vector<8x256xf32>
    %c68 = arith.constant 68 : index
    %371 = memref.load %arg2[%c68] : memref<108xf32, #tpu.memory_space<smem>>
    %372 = vector.broadcast %371 : f32 to vector<8x256xf32>
    %373 = arith.mulf %372, %370 : vector<8x256xf32>
    %374 = arith.addf %356, %373 : vector<8x256xf32>
    %c69 = arith.constant 69 : index
    %375 = memref.load %arg2[%c69] : memref<108xf32, #tpu.memory_space<smem>>
    %376 = vector.broadcast %375 : f32 to vector<8x256xf32>
    %377 = arith.mulf %376, %370 : vector<8x256xf32>
    %378 = arith.addf %360, %377 : vector<8x256xf32>
    %c70 = arith.constant 70 : index
    %379 = memref.load %arg2[%c70] : memref<108xf32, #tpu.memory_space<smem>>
    %380 = vector.broadcast %379 : f32 to vector<8x256xf32>
    %381 = arith.mulf %380, %370 : vector<8x256xf32>
    %382 = arith.addf %364, %381 : vector<8x256xf32>
    %c71 = arith.constant 71 : index
    %383 = memref.load %arg2[%c71] : memref<108xf32, #tpu.memory_space<smem>>
    %384 = vector.broadcast %383 : f32 to vector<8x256xf32>
    %385 = arith.mulf %384, %370 : vector<8x256xf32>
    %386 = arith.addf %368, %385 : vector<8x256xf32>
    %cst_21 = arith.constant 0.000000e+00 : f32
    %387 = vector.broadcast %cst_21 : f32 to vector<3x8x15xf32>
    %388 = vector.extract_strided_slice %0 {offsets = [0, 0, 15], sizes = [3, 8, 241], strides = [1, 1, 1]} : vector<3x8x256xf32> to vector<3x8x241xf32>
    %389 = tpu.concatenate %388, %387 in 2 : vector<3x8x241xf32>, vector<3x8x15xf32> -> vector<3x8x256xf32>
    %cst_22 = arith.constant 0.000000e+00 : f32
    %390 = vector.shape_cast %26 : vector<1x1x256xi1> to vector<1x1x256xi1>
    %391 = vector.broadcast %390 : vector<1x1x256xi1> to vector<3x8x256xi1>
    %392 = vector.broadcast %cst_22 : f32 to vector<3x8x256xf32>
    %393 = arith.select %391, %389, %392 : vector<3x8x256xi1>, vector<3x8x256xf32>
    %394 = vector.extract_strided_slice %393 {offsets = [0, 0, 0], sizes = [1, 8, 256], strides = [1, 1, 1]} : vector<3x8x256xf32> to vector<1x8x256xf32>
    %395 = vector.shape_cast %394 : vector<1x8x256xf32> to vector<8x256xf32>
    %c72 = arith.constant 72 : index
    %396 = memref.load %arg2[%c72] : memref<108xf32, #tpu.memory_space<smem>>
    %397 = vector.broadcast %396 : f32 to vector<8x256xf32>
    %398 = arith.mulf %397, %395 : vector<8x256xf32>
    %399 = arith.addf %374, %398 : vector<8x256xf32>
    %c73 = arith.constant 73 : index
    %400 = memref.load %arg2[%c73] : memref<108xf32, #tpu.memory_space<smem>>
    %401 = vector.broadcast %400 : f32 to vector<8x256xf32>
    %402 = arith.mulf %401, %395 : vector<8x256xf32>
    %403 = arith.addf %378, %402 : vector<8x256xf32>
    %c74 = arith.constant 74 : index
    %404 = memref.load %arg2[%c74] : memref<108xf32, #tpu.memory_space<smem>>
    %405 = vector.broadcast %404 : f32 to vector<8x256xf32>
    %406 = arith.mulf %405, %395 : vector<8x256xf32>
    %407 = arith.addf %382, %406 : vector<8x256xf32>
    %c75 = arith.constant 75 : index
    %408 = memref.load %arg2[%c75] : memref<108xf32, #tpu.memory_space<smem>>
    %409 = vector.broadcast %408 : f32 to vector<8x256xf32>
    %410 = arith.mulf %409, %395 : vector<8x256xf32>
    %411 = arith.addf %386, %410 : vector<8x256xf32>
    %412 = vector.extract_strided_slice %393 {offsets = [1, 0, 0], sizes = [1, 8, 256], strides = [1, 1, 1]} : vector<3x8x256xf32> to vector<1x8x256xf32>
    %413 = vector.shape_cast %412 : vector<1x8x256xf32> to vector<8x256xf32>
    %c76 = arith.constant 76 : index
    %414 = memref.load %arg2[%c76] : memref<108xf32, #tpu.memory_space<smem>>
    %415 = vector.broadcast %414 : f32 to vector<8x256xf32>
    %416 = arith.mulf %415, %413 : vector<8x256xf32>
    %417 = arith.addf %399, %416 : vector<8x256xf32>
    %c77 = arith.constant 77 : index
    %418 = memref.load %arg2[%c77] : memref<108xf32, #tpu.memory_space<smem>>
    %419 = vector.broadcast %418 : f32 to vector<8x256xf32>
    %420 = arith.mulf %419, %413 : vector<8x256xf32>
    %421 = arith.addf %403, %420 : vector<8x256xf32>
    %c78 = arith.constant 78 : index
    %422 = memref.load %arg2[%c78] : memref<108xf32, #tpu.memory_space<smem>>
    %423 = vector.broadcast %422 : f32 to vector<8x256xf32>
    %424 = arith.mulf %423, %413 : vector<8x256xf32>
    %425 = arith.addf %407, %424 : vector<8x256xf32>
    %c79 = arith.constant 79 : index
    %426 = memref.load %arg2[%c79] : memref<108xf32, #tpu.memory_space<smem>>
    %427 = vector.broadcast %426 : f32 to vector<8x256xf32>
    %428 = arith.mulf %427, %413 : vector<8x256xf32>
    %429 = arith.addf %411, %428 : vector<8x256xf32>
    %430 = vector.extract_strided_slice %393 {offsets = [2, 0, 0], sizes = [1, 8, 256], strides = [1, 1, 1]} : vector<3x8x256xf32> to vector<1x8x256xf32>
    %431 = vector.shape_cast %430 : vector<1x8x256xf32> to vector<8x256xf32>
    %c80 = arith.constant 80 : index
    %432 = memref.load %arg2[%c80] : memref<108xf32, #tpu.memory_space<smem>>
    %433 = vector.broadcast %432 : f32 to vector<8x256xf32>
    %434 = arith.mulf %433, %431 : vector<8x256xf32>
    %435 = arith.addf %417, %434 : vector<8x256xf32>
    %c81 = arith.constant 81 : index
    %436 = memref.load %arg2[%c81] : memref<108xf32, #tpu.memory_space<smem>>
    %437 = vector.broadcast %436 : f32 to vector<8x256xf32>
    %438 = arith.mulf %437, %431 : vector<8x256xf32>
    %439 = arith.addf %421, %438 : vector<8x256xf32>
    %c82 = arith.constant 82 : index
    %440 = memref.load %arg2[%c82] : memref<108xf32, #tpu.memory_space<smem>>
    %441 = vector.broadcast %440 : f32 to vector<8x256xf32>
    %442 = arith.mulf %441, %431 : vector<8x256xf32>
    %443 = arith.addf %425, %442 : vector<8x256xf32>
    %c83 = arith.constant 83 : index
    %444 = memref.load %arg2[%c83] : memref<108xf32, #tpu.memory_space<smem>>
    %445 = vector.broadcast %444 : f32 to vector<8x256xf32>
    %446 = arith.mulf %445, %431 : vector<8x256xf32>
    %447 = arith.addf %429, %446 : vector<8x256xf32>
    %cst_23 = arith.constant 0.000000e+00 : f32
    %448 = vector.broadcast %cst_23 : f32 to vector<3x8x16xf32>
    %449 = vector.extract_strided_slice %0 {offsets = [0, 0, 16], sizes = [3, 8, 240], strides = [1, 1, 1]} : vector<3x8x256xf32> to vector<3x8x240xf32>
    %450 = tpu.concatenate %449, %448 in 2 : vector<3x8x240xf32>, vector<3x8x16xf32> -> vector<3x8x256xf32>
    %451 = vector.extract_strided_slice %450 {offsets = [0, 0, 0], sizes = [1, 8, 256], strides = [1, 1, 1]} : vector<3x8x256xf32> to vector<1x8x256xf32>
    %452 = vector.shape_cast %451 : vector<1x8x256xf32> to vector<8x256xf32>
    %c84 = arith.constant 84 : index
    %453 = memref.load %arg2[%c84] : memref<108xf32, #tpu.memory_space<smem>>
    %454 = vector.broadcast %453 : f32 to vector<8x256xf32>
    %455 = arith.mulf %454, %452 : vector<8x256xf32>
    %456 = arith.addf %435, %455 : vector<8x256xf32>
    %c85 = arith.constant 85 : index
    %457 = memref.load %arg2[%c85] : memref<108xf32, #tpu.memory_space<smem>>
    %458 = vector.broadcast %457 : f32 to vector<8x256xf32>
    %459 = arith.mulf %458, %452 : vector<8x256xf32>
    %460 = arith.addf %439, %459 : vector<8x256xf32>
    %c86 = arith.constant 86 : index
    %461 = memref.load %arg2[%c86] : memref<108xf32, #tpu.memory_space<smem>>
    %462 = vector.broadcast %461 : f32 to vector<8x256xf32>
    %463 = arith.mulf %462, %452 : vector<8x256xf32>
    %464 = arith.addf %443, %463 : vector<8x256xf32>
    %c87 = arith.constant 87 : index
    %465 = memref.load %arg2[%c87] : memref<108xf32, #tpu.memory_space<smem>>
    %466 = vector.broadcast %465 : f32 to vector<8x256xf32>
    %467 = arith.mulf %466, %452 : vector<8x256xf32>
    %468 = arith.addf %447, %467 : vector<8x256xf32>
    %469 = vector.extract_strided_slice %450 {offsets = [1, 0, 0], sizes = [1, 8, 256], strides = [1, 1, 1]} : vector<3x8x256xf32> to vector<1x8x256xf32>
    %470 = vector.shape_cast %469 : vector<1x8x256xf32> to vector<8x256xf32>
    %c88 = arith.constant 88 : index
    %471 = memref.load %arg2[%c88] : memref<108xf32, #tpu.memory_space<smem>>
    %472 = vector.broadcast %471 : f32 to vector<8x256xf32>
    %473 = arith.mulf %472, %470 : vector<8x256xf32>
    %474 = arith.addf %456, %473 : vector<8x256xf32>
    %c89 = arith.constant 89 : index
    %475 = memref.load %arg2[%c89] : memref<108xf32, #tpu.memory_space<smem>>
    %476 = vector.broadcast %475 : f32 to vector<8x256xf32>
    %477 = arith.mulf %476, %470 : vector<8x256xf32>
    %478 = arith.addf %460, %477 : vector<8x256xf32>
    %c90 = arith.constant 90 : index
    %479 = memref.load %arg2[%c90] : memref<108xf32, #tpu.memory_space<smem>>
    %480 = vector.broadcast %479 : f32 to vector<8x256xf32>
    %481 = arith.mulf %480, %470 : vector<8x256xf32>
    %482 = arith.addf %464, %481 : vector<8x256xf32>
    %c91 = arith.constant 91 : index
    %483 = memref.load %arg2[%c91] : memref<108xf32, #tpu.memory_space<smem>>
    %484 = vector.broadcast %483 : f32 to vector<8x256xf32>
    %485 = arith.mulf %484, %470 : vector<8x256xf32>
    %486 = arith.addf %468, %485 : vector<8x256xf32>
    %487 = vector.extract_strided_slice %450 {offsets = [2, 0, 0], sizes = [1, 8, 256], strides = [1, 1, 1]} : vector<3x8x256xf32> to vector<1x8x256xf32>
    %488 = vector.shape_cast %487 : vector<1x8x256xf32> to vector<8x256xf32>
    %c92 = arith.constant 92 : index
    %489 = memref.load %arg2[%c92] : memref<108xf32, #tpu.memory_space<smem>>
    %490 = vector.broadcast %489 : f32 to vector<8x256xf32>
    %491 = arith.mulf %490, %488 : vector<8x256xf32>
    %492 = arith.addf %474, %491 : vector<8x256xf32>
    %c93 = arith.constant 93 : index
    %493 = memref.load %arg2[%c93] : memref<108xf32, #tpu.memory_space<smem>>
    %494 = vector.broadcast %493 : f32 to vector<8x256xf32>
    %495 = arith.mulf %494, %488 : vector<8x256xf32>
    %496 = arith.addf %478, %495 : vector<8x256xf32>
    %c94 = arith.constant 94 : index
    %497 = memref.load %arg2[%c94] : memref<108xf32, #tpu.memory_space<smem>>
    %498 = vector.broadcast %497 : f32 to vector<8x256xf32>
    %499 = arith.mulf %498, %488 : vector<8x256xf32>
    %500 = arith.addf %482, %499 : vector<8x256xf32>
    %c95 = arith.constant 95 : index
    %501 = memref.load %arg2[%c95] : memref<108xf32, #tpu.memory_space<smem>>
    %502 = vector.broadcast %501 : f32 to vector<8x256xf32>
    %503 = arith.mulf %502, %488 : vector<8x256xf32>
    %504 = arith.addf %486, %503 : vector<8x256xf32>
    %cst_24 = arith.constant 0.000000e+00 : f32
    %505 = vector.broadcast %cst_24 : f32 to vector<3x8x17xf32>
    %506 = vector.extract_strided_slice %0 {offsets = [0, 0, 17], sizes = [3, 8, 239], strides = [1, 1, 1]} : vector<3x8x256xf32> to vector<3x8x239xf32>
    %507 = tpu.concatenate %506, %505 in 2 : vector<3x8x239xf32>, vector<3x8x17xf32> -> vector<3x8x256xf32>
    %cst_25 = arith.constant 0.000000e+00 : f32
    %508 = vector.shape_cast %35 : vector<1x1x256xi1> to vector<1x1x256xi1>
    %509 = vector.broadcast %508 : vector<1x1x256xi1> to vector<3x8x256xi1>
    %510 = vector.broadcast %cst_25 : f32 to vector<3x8x256xf32>
    %511 = arith.select %509, %507, %510 : vector<3x8x256xi1>, vector<3x8x256xf32>
    %512 = vector.extract_strided_slice %511 {offsets = [0, 0, 0], sizes = [1, 8, 256], strides = [1, 1, 1]} : vector<3x8x256xf32> to vector<1x8x256xf32>
    %513 = vector.shape_cast %512 : vector<1x8x256xf32> to vector<8x256xf32>
    %c96 = arith.constant 96 : index
    %514 = memref.load %arg2[%c96] : memref<108xf32, #tpu.memory_space<smem>>
    %515 = vector.broadcast %514 : f32 to vector<8x256xf32>
    %516 = arith.mulf %515, %513 : vector<8x256xf32>
    %517 = arith.addf %492, %516 : vector<8x256xf32>
    %c97 = arith.constant 97 : index
    %518 = memref.load %arg2[%c97] : memref<108xf32, #tpu.memory_space<smem>>
    %519 = vector.broadcast %518 : f32 to vector<8x256xf32>
    %520 = arith.mulf %519, %513 : vector<8x256xf32>
    %521 = arith.addf %496, %520 : vector<8x256xf32>
    %c98 = arith.constant 98 : index
    %522 = memref.load %arg2[%c98] : memref<108xf32, #tpu.memory_space<smem>>
    %523 = vector.broadcast %522 : f32 to vector<8x256xf32>
    %524 = arith.mulf %523, %513 : vector<8x256xf32>
    %525 = arith.addf %500, %524 : vector<8x256xf32>
    %c99 = arith.constant 99 : index
    %526 = memref.load %arg2[%c99] : memref<108xf32, #tpu.memory_space<smem>>
    %527 = vector.broadcast %526 : f32 to vector<8x256xf32>
    %528 = arith.mulf %527, %513 : vector<8x256xf32>
    %529 = arith.addf %504, %528 : vector<8x256xf32>
    %530 = vector.extract_strided_slice %511 {offsets = [1, 0, 0], sizes = [1, 8, 256], strides = [1, 1, 1]} : vector<3x8x256xf32> to vector<1x8x256xf32>
    %531 = vector.shape_cast %530 : vector<1x8x256xf32> to vector<8x256xf32>
    %c100 = arith.constant 100 : index
    %532 = memref.load %arg2[%c100] : memref<108xf32, #tpu.memory_space<smem>>
    %533 = vector.broadcast %532 : f32 to vector<8x256xf32>
    %534 = arith.mulf %533, %531 : vector<8x256xf32>
    %535 = arith.addf %517, %534 : vector<8x256xf32>
    %c101 = arith.constant 101 : index
    %536 = memref.load %arg2[%c101] : memref<108xf32, #tpu.memory_space<smem>>
    %537 = vector.broadcast %536 : f32 to vector<8x256xf32>
    %538 = arith.mulf %537, %531 : vector<8x256xf32>
    %539 = arith.addf %521, %538 : vector<8x256xf32>
    %c102 = arith.constant 102 : index
    %540 = memref.load %arg2[%c102] : memref<108xf32, #tpu.memory_space<smem>>
    %541 = vector.broadcast %540 : f32 to vector<8x256xf32>
    %542 = arith.mulf %541, %531 : vector<8x256xf32>
    %543 = arith.addf %525, %542 : vector<8x256xf32>
    %c103 = arith.constant 103 : index
    %544 = memref.load %arg2[%c103] : memref<108xf32, #tpu.memory_space<smem>>
    %545 = vector.broadcast %544 : f32 to vector<8x256xf32>
    %546 = arith.mulf %545, %531 : vector<8x256xf32>
    %547 = arith.addf %529, %546 : vector<8x256xf32>
    %548 = vector.extract_strided_slice %511 {offsets = [2, 0, 0], sizes = [1, 8, 256], strides = [1, 1, 1]} : vector<3x8x256xf32> to vector<1x8x256xf32>
    %549 = vector.shape_cast %548 : vector<1x8x256xf32> to vector<8x256xf32>
    %c104 = arith.constant 104 : index
    %550 = memref.load %arg2[%c104] : memref<108xf32, #tpu.memory_space<smem>>
    %551 = vector.broadcast %550 : f32 to vector<8x256xf32>
    %552 = arith.mulf %551, %549 : vector<8x256xf32>
    %553 = arith.addf %535, %552 : vector<8x256xf32>
    %c105 = arith.constant 105 : index
    %554 = memref.load %arg2[%c105] : memref<108xf32, #tpu.memory_space<smem>>
    %555 = vector.broadcast %554 : f32 to vector<8x256xf32>
    %556 = arith.mulf %555, %549 : vector<8x256xf32>
    %557 = arith.addf %539, %556 : vector<8x256xf32>
    %c106 = arith.constant 106 : index
    %558 = memref.load %arg2[%c106] : memref<108xf32, #tpu.memory_space<smem>>
    %559 = vector.broadcast %558 : f32 to vector<8x256xf32>
    %560 = arith.mulf %559, %549 : vector<8x256xf32>
    %561 = arith.addf %543, %560 : vector<8x256xf32>
    %c107 = arith.constant 107 : index
    %562 = memref.load %arg2[%c107] : memref<108xf32, #tpu.memory_space<smem>>
    %563 = vector.broadcast %562 : f32 to vector<8x256xf32>
    %564 = arith.mulf %563, %549 : vector<8x256xf32>
    %565 = arith.addf %547, %564 : vector<8x256xf32>
    %c0_26 = arith.constant 0 : index
    %566 = memref.load %arg3[%c0_26] : memref<4xf32, #tpu.memory_space<smem>>
    %567 = vector.broadcast %566 : f32 to vector<8x256xf32>
    %568 = arith.addf %553, %567 : vector<8x256xf32>
    %cst_27 = arith.constant 0.000000e+00 : f32
    %569 = vector.broadcast %cst_27 : f32 to vector<8x256xf32>
    %570 = arith.maximumf %568, %569 : vector<8x256xf32>
    %c1_28 = arith.constant 1 : index
    %571 = memref.load %arg3[%c1_28] : memref<4xf32, #tpu.memory_space<smem>>
    %572 = vector.broadcast %571 : f32 to vector<8x256xf32>
    %573 = arith.addf %557, %572 : vector<8x256xf32>
    %cst_29 = arith.constant 0.000000e+00 : f32
    %574 = vector.broadcast %cst_29 : f32 to vector<8x256xf32>
    %575 = arith.maximumf %573, %574 : vector<8x256xf32>
    %c2_30 = arith.constant 2 : index
    %576 = memref.load %arg3[%c2_30] : memref<4xf32, #tpu.memory_space<smem>>
    %577 = vector.broadcast %576 : f32 to vector<8x256xf32>
    %578 = arith.addf %561, %577 : vector<8x256xf32>
    %cst_31 = arith.constant 0.000000e+00 : f32
    %579 = vector.broadcast %cst_31 : f32 to vector<8x256xf32>
    %580 = arith.maximumf %578, %579 : vector<8x256xf32>
    %c3_32 = arith.constant 3 : index
    %581 = memref.load %arg3[%c3_32] : memref<4xf32, #tpu.memory_space<smem>>
    %582 = vector.broadcast %581 : f32 to vector<8x256xf32>
    %583 = arith.addf %565, %582 : vector<8x256xf32>
    %cst_33 = arith.constant 0.000000e+00 : f32
    %584 = vector.broadcast %cst_33 : f32 to vector<8x256xf32>
    %585 = arith.maximumf %583, %584 : vector<8x256xf32>
    %586 = vector.shape_cast %570 : vector<8x256xf32> to vector<1x8x256xf32>
    %587 = vector.shape_cast %575 : vector<8x256xf32> to vector<1x8x256xf32>
    %588 = vector.shape_cast %580 : vector<8x256xf32> to vector<1x8x256xf32>
    %589 = vector.shape_cast %585 : vector<8x256xf32> to vector<1x8x256xf32>
    %590 = tpu.concatenate %586, %587, %588, %589 in 0 : vector<1x8x256xf32>, vector<1x8x256xf32>, vector<1x8x256xf32>, vector<1x8x256xf32> -> vector<4x8x256xf32>
    %cst_34 = arith.constant 0.000000e+00 : f32
    %591 = vector.broadcast %cst_34 : f32 to vector<4x8x17xf32>
    %592 = vector.extract_strided_slice %590 {offsets = [0, 0, 0], sizes = [4, 8, 239], strides = [1, 1, 1]} : vector<4x8x256xf32> to vector<4x8x239xf32>
    %593 = tpu.concatenate %591, %592 in 2 : vector<4x8x17xf32>, vector<4x8x239xf32> -> vector<4x8x256xf32>
    %cst_35 = arith.constant 0.000000e+00 : f32
    %594 = vector.shape_cast %26 : vector<1x1x256xi1> to vector<1x1x256xi1>
    %595 = vector.broadcast %594 : vector<1x1x256xi1> to vector<4x8x256xi1>
    %596 = vector.broadcast %cst_35 : f32 to vector<4x8x256xf32>
    %597 = arith.select %595, %593, %596 : vector<4x8x256xi1>, vector<4x8x256xf32>
    %598 = vector.extract_strided_slice %597 {offsets = [0, 0, 0], sizes = [1, 8, 256], strides = [1, 1, 1]} : vector<4x8x256xf32> to vector<1x8x256xf32>
    %599 = vector.shape_cast %598 : vector<1x8x256xf32> to vector<8x256xf32>
    %c0_36 = arith.constant 0 : index
    %600 = memref.load %arg4[%c0_36] : memref<36xf32, #tpu.memory_space<smem>>
    %601 = vector.broadcast %600 : f32 to vector<8x256xf32>
    %602 = arith.mulf %601, %599 : vector<8x256xf32>
    %603 = vector.extract_strided_slice %597 {offsets = [1, 0, 0], sizes = [1, 8, 256], strides = [1, 1, 1]} : vector<4x8x256xf32> to vector<1x8x256xf32>
    %604 = vector.shape_cast %603 : vector<1x8x256xf32> to vector<8x256xf32>
    %c1_37 = arith.constant 1 : index
    %605 = memref.load %arg4[%c1_37] : memref<36xf32, #tpu.memory_space<smem>>
    %606 = vector.broadcast %605 : f32 to vector<8x256xf32>
    %607 = arith.mulf %606, %604 : vector<8x256xf32>
    %608 = arith.addf %602, %607 : vector<8x256xf32>
    %609 = vector.extract_strided_slice %597 {offsets = [2, 0, 0], sizes = [1, 8, 256], strides = [1, 1, 1]} : vector<4x8x256xf32> to vector<1x8x256xf32>
    %610 = vector.shape_cast %609 : vector<1x8x256xf32> to vector<8x256xf32>
    %c2_38 = arith.constant 2 : index
    %611 = memref.load %arg4[%c2_38] : memref<36xf32, #tpu.memory_space<smem>>
    %612 = vector.broadcast %611 : f32 to vector<8x256xf32>
    %613 = arith.mulf %612, %610 : vector<8x256xf32>
    %614 = arith.addf %608, %613 : vector<8x256xf32>
    %615 = vector.extract_strided_slice %597 {offsets = [3, 0, 0], sizes = [1, 8, 256], strides = [1, 1, 1]} : vector<4x8x256xf32> to vector<1x8x256xf32>
    %616 = vector.shape_cast %615 : vector<1x8x256xf32> to vector<8x256xf32>
    %c3_39 = arith.constant 3 : index
    %617 = memref.load %arg4[%c3_39] : memref<36xf32, #tpu.memory_space<smem>>
    %618 = vector.broadcast %617 : f32 to vector<8x256xf32>
    %619 = arith.mulf %618, %616 : vector<8x256xf32>
    %620 = arith.addf %614, %619 : vector<8x256xf32>
    %cst_40 = arith.constant 0.000000e+00 : f32
    %621 = vector.broadcast %cst_40 : f32 to vector<4x8x16xf32>
    %622 = vector.extract_strided_slice %590 {offsets = [0, 0, 0], sizes = [4, 8, 240], strides = [1, 1, 1]} : vector<4x8x256xf32> to vector<4x8x240xf32>
    %623 = tpu.concatenate %621, %622 in 2 : vector<4x8x16xf32>, vector<4x8x240xf32> -> vector<4x8x256xf32>
    %624 = vector.extract_strided_slice %623 {offsets = [0, 0, 0], sizes = [1, 8, 256], strides = [1, 1, 1]} : vector<4x8x256xf32> to vector<1x8x256xf32>
    %625 = vector.shape_cast %624 : vector<1x8x256xf32> to vector<8x256xf32>
    %c4_41 = arith.constant 4 : index
    %626 = memref.load %arg4[%c4_41] : memref<36xf32, #tpu.memory_space<smem>>
    %627 = vector.broadcast %626 : f32 to vector<8x256xf32>
    %628 = arith.mulf %627, %625 : vector<8x256xf32>
    %629 = arith.addf %620, %628 : vector<8x256xf32>
    %630 = vector.extract_strided_slice %623 {offsets = [1, 0, 0], sizes = [1, 8, 256], strides = [1, 1, 1]} : vector<4x8x256xf32> to vector<1x8x256xf32>
    %631 = vector.shape_cast %630 : vector<1x8x256xf32> to vector<8x256xf32>
    %c5_42 = arith.constant 5 : index
    %632 = memref.load %arg4[%c5_42] : memref<36xf32, #tpu.memory_space<smem>>
    %633 = vector.broadcast %632 : f32 to vector<8x256xf32>
    %634 = arith.mulf %633, %631 : vector<8x256xf32>
    %635 = arith.addf %629, %634 : vector<8x256xf32>
    %636 = vector.extract_strided_slice %623 {offsets = [2, 0, 0], sizes = [1, 8, 256], strides = [1, 1, 1]} : vector<4x8x256xf32> to vector<1x8x256xf32>
    %637 = vector.shape_cast %636 : vector<1x8x256xf32> to vector<8x256xf32>
    %c6_43 = arith.constant 6 : index
    %638 = memref.load %arg4[%c6_43] : memref<36xf32, #tpu.memory_space<smem>>
    %639 = vector.broadcast %638 : f32 to vector<8x256xf32>
    %640 = arith.mulf %639, %637 : vector<8x256xf32>
    %641 = arith.addf %635, %640 : vector<8x256xf32>
    %642 = vector.extract_strided_slice %623 {offsets = [3, 0, 0], sizes = [1, 8, 256], strides = [1, 1, 1]} : vector<4x8x256xf32> to vector<1x8x256xf32>
    %643 = vector.shape_cast %642 : vector<1x8x256xf32> to vector<8x256xf32>
    %c7_44 = arith.constant 7 : index
    %644 = memref.load %arg4[%c7_44] : memref<36xf32, #tpu.memory_space<smem>>
    %645 = vector.broadcast %644 : f32 to vector<8x256xf32>
    %646 = arith.mulf %645, %643 : vector<8x256xf32>
    %647 = arith.addf %641, %646 : vector<8x256xf32>
    %cst_45 = arith.constant 0.000000e+00 : f32
    %648 = vector.broadcast %cst_45 : f32 to vector<4x8x15xf32>
    %649 = vector.extract_strided_slice %590 {offsets = [0, 0, 0], sizes = [4, 8, 241], strides = [1, 1, 1]} : vector<4x8x256xf32> to vector<4x8x241xf32>
    %650 = tpu.concatenate %648, %649 in 2 : vector<4x8x15xf32>, vector<4x8x241xf32> -> vector<4x8x256xf32>
    %cst_46 = arith.constant 0.000000e+00 : f32
    %651 = vector.shape_cast %35 : vector<1x1x256xi1> to vector<1x1x256xi1>
    %652 = vector.broadcast %651 : vector<1x1x256xi1> to vector<4x8x256xi1>
    %653 = vector.broadcast %cst_46 : f32 to vector<4x8x256xf32>
    %654 = arith.select %652, %650, %653 : vector<4x8x256xi1>, vector<4x8x256xf32>
    %655 = vector.extract_strided_slice %654 {offsets = [0, 0, 0], sizes = [1, 8, 256], strides = [1, 1, 1]} : vector<4x8x256xf32> to vector<1x8x256xf32>
    %656 = vector.shape_cast %655 : vector<1x8x256xf32> to vector<8x256xf32>
    %c8_47 = arith.constant 8 : index
    %657 = memref.load %arg4[%c8_47] : memref<36xf32, #tpu.memory_space<smem>>
    %658 = vector.broadcast %657 : f32 to vector<8x256xf32>
    %659 = arith.mulf %658, %656 : vector<8x256xf32>
    %660 = arith.addf %647, %659 : vector<8x256xf32>
    %661 = vector.extract_strided_slice %654 {offsets = [1, 0, 0], sizes = [1, 8, 256], strides = [1, 1, 1]} : vector<4x8x256xf32> to vector<1x8x256xf32>
    %662 = vector.shape_cast %661 : vector<1x8x256xf32> to vector<8x256xf32>
    %c9_48 = arith.constant 9 : index
    %663 = memref.load %arg4[%c9_48] : memref<36xf32, #tpu.memory_space<smem>>
    %664 = vector.broadcast %663 : f32 to vector<8x256xf32>
    %665 = arith.mulf %664, %662 : vector<8x256xf32>
    %666 = arith.addf %660, %665 : vector<8x256xf32>
    %667 = vector.extract_strided_slice %654 {offsets = [2, 0, 0], sizes = [1, 8, 256], strides = [1, 1, 1]} : vector<4x8x256xf32> to vector<1x8x256xf32>
    %668 = vector.shape_cast %667 : vector<1x8x256xf32> to vector<8x256xf32>
    %c10_49 = arith.constant 10 : index
    %669 = memref.load %arg4[%c10_49] : memref<36xf32, #tpu.memory_space<smem>>
    %670 = vector.broadcast %669 : f32 to vector<8x256xf32>
    %671 = arith.mulf %670, %668 : vector<8x256xf32>
    %672 = arith.addf %666, %671 : vector<8x256xf32>
    %673 = vector.extract_strided_slice %654 {offsets = [3, 0, 0], sizes = [1, 8, 256], strides = [1, 1, 1]} : vector<4x8x256xf32> to vector<1x8x256xf32>
    %674 = vector.shape_cast %673 : vector<1x8x256xf32> to vector<8x256xf32>
    %c11_50 = arith.constant 11 : index
    %675 = memref.load %arg4[%c11_50] : memref<36xf32, #tpu.memory_space<smem>>
    %676 = vector.broadcast %675 : f32 to vector<8x256xf32>
    %677 = arith.mulf %676, %674 : vector<8x256xf32>
    %678 = arith.addf %672, %677 : vector<8x256xf32>
    %cst_51 = arith.constant 0.000000e+00 : f32
    %679 = vector.broadcast %cst_51 : f32 to vector<4x8x1xf32>
    %680 = vector.extract_strided_slice %590 {offsets = [0, 0, 0], sizes = [4, 8, 255], strides = [1, 1, 1]} : vector<4x8x256xf32> to vector<4x8x255xf32>
    %681 = tpu.concatenate %679, %680 in 2 : vector<4x8x1xf32>, vector<4x8x255xf32> -> vector<4x8x256xf32>
    %cst_52 = arith.constant 0.000000e+00 : f32
    %682 = vector.shape_cast %26 : vector<1x1x256xi1> to vector<1x1x256xi1>
    %683 = vector.broadcast %682 : vector<1x1x256xi1> to vector<4x8x256xi1>
    %684 = vector.broadcast %cst_52 : f32 to vector<4x8x256xf32>
    %685 = arith.select %683, %681, %684 : vector<4x8x256xi1>, vector<4x8x256xf32>
    %686 = vector.extract_strided_slice %685 {offsets = [0, 0, 0], sizes = [1, 8, 256], strides = [1, 1, 1]} : vector<4x8x256xf32> to vector<1x8x256xf32>
    %687 = vector.shape_cast %686 : vector<1x8x256xf32> to vector<8x256xf32>
    %c12_53 = arith.constant 12 : index
    %688 = memref.load %arg4[%c12_53] : memref<36xf32, #tpu.memory_space<smem>>
    %689 = vector.broadcast %688 : f32 to vector<8x256xf32>
    %690 = arith.mulf %689, %687 : vector<8x256xf32>
    %691 = arith.addf %678, %690 : vector<8x256xf32>
    %692 = vector.extract_strided_slice %685 {offsets = [1, 0, 0], sizes = [1, 8, 256], strides = [1, 1, 1]} : vector<4x8x256xf32> to vector<1x8x256xf32>
    %693 = vector.shape_cast %692 : vector<1x8x256xf32> to vector<8x256xf32>
    %c13_54 = arith.constant 13 : index
    %694 = memref.load %arg4[%c13_54] : memref<36xf32, #tpu.memory_space<smem>>
    %695 = vector.broadcast %694 : f32 to vector<8x256xf32>
    %696 = arith.mulf %695, %693 : vector<8x256xf32>
    %697 = arith.addf %691, %696 : vector<8x256xf32>
    %698 = vector.extract_strided_slice %685 {offsets = [2, 0, 0], sizes = [1, 8, 256], strides = [1, 1, 1]} : vector<4x8x256xf32> to vector<1x8x256xf32>
    %699 = vector.shape_cast %698 : vector<1x8x256xf32> to vector<8x256xf32>
    %c14_55 = arith.constant 14 : index
    %700 = memref.load %arg4[%c14_55] : memref<36xf32, #tpu.memory_space<smem>>
    %701 = vector.broadcast %700 : f32 to vector<8x256xf32>
    %702 = arith.mulf %701, %699 : vector<8x256xf32>
    %703 = arith.addf %697, %702 : vector<8x256xf32>
    %704 = vector.extract_strided_slice %685 {offsets = [3, 0, 0], sizes = [1, 8, 256], strides = [1, 1, 1]} : vector<4x8x256xf32> to vector<1x8x256xf32>
    %705 = vector.shape_cast %704 : vector<1x8x256xf32> to vector<8x256xf32>
    %c15_56 = arith.constant 15 : index
    %706 = memref.load %arg4[%c15_56] : memref<36xf32, #tpu.memory_space<smem>>
    %707 = vector.broadcast %706 : f32 to vector<8x256xf32>
    %708 = arith.mulf %707, %705 : vector<8x256xf32>
    %709 = arith.addf %703, %708 : vector<8x256xf32>
    %710 = vector.extract_strided_slice %590 {offsets = [0, 0, 0], sizes = [1, 8, 256], strides = [1, 1, 1]} : vector<4x8x256xf32> to vector<1x8x256xf32>
    %711 = vector.shape_cast %710 : vector<1x8x256xf32> to vector<8x256xf32>
    %c16_57 = arith.constant 16 : index
    %712 = memref.load %arg4[%c16_57] : memref<36xf32, #tpu.memory_space<smem>>
    %713 = vector.broadcast %712 : f32 to vector<8x256xf32>
    %714 = arith.mulf %713, %711 : vector<8x256xf32>
    %715 = arith.addf %709, %714 : vector<8x256xf32>
    %716 = vector.extract_strided_slice %590 {offsets = [1, 0, 0], sizes = [1, 8, 256], strides = [1, 1, 1]} : vector<4x8x256xf32> to vector<1x8x256xf32>
    %717 = vector.shape_cast %716 : vector<1x8x256xf32> to vector<8x256xf32>
    %c17_58 = arith.constant 17 : index
    %718 = memref.load %arg4[%c17_58] : memref<36xf32, #tpu.memory_space<smem>>
    %719 = vector.broadcast %718 : f32 to vector<8x256xf32>
    %720 = arith.mulf %719, %717 : vector<8x256xf32>
    %721 = arith.addf %715, %720 : vector<8x256xf32>
    %722 = vector.extract_strided_slice %590 {offsets = [2, 0, 0], sizes = [1, 8, 256], strides = [1, 1, 1]} : vector<4x8x256xf32> to vector<1x8x256xf32>
    %723 = vector.shape_cast %722 : vector<1x8x256xf32> to vector<8x256xf32>
    %c18_59 = arith.constant 18 : index
    %724 = memref.load %arg4[%c18_59] : memref<36xf32, #tpu.memory_space<smem>>
    %725 = vector.broadcast %724 : f32 to vector<8x256xf32>
    %726 = arith.mulf %725, %723 : vector<8x256xf32>
    %727 = arith.addf %721, %726 : vector<8x256xf32>
    %728 = vector.extract_strided_slice %590 {offsets = [3, 0, 0], sizes = [1, 8, 256], strides = [1, 1, 1]} : vector<4x8x256xf32> to vector<1x8x256xf32>
    %729 = vector.shape_cast %728 : vector<1x8x256xf32> to vector<8x256xf32>
    %c19_60 = arith.constant 19 : index
    %730 = memref.load %arg4[%c19_60] : memref<36xf32, #tpu.memory_space<smem>>
    %731 = vector.broadcast %730 : f32 to vector<8x256xf32>
    %732 = arith.mulf %731, %729 : vector<8x256xf32>
    %733 = arith.addf %727, %732 : vector<8x256xf32>
    %cst_61 = arith.constant 0.000000e+00 : f32
    %734 = vector.broadcast %cst_61 : f32 to vector<4x8x1xf32>
    %735 = vector.extract_strided_slice %590 {offsets = [0, 0, 1], sizes = [4, 8, 255], strides = [1, 1, 1]} : vector<4x8x256xf32> to vector<4x8x255xf32>
    %736 = tpu.concatenate %735, %734 in 2 : vector<4x8x255xf32>, vector<4x8x1xf32> -> vector<4x8x256xf32>
    %cst_62 = arith.constant 0.000000e+00 : f32
    %737 = vector.shape_cast %35 : vector<1x1x256xi1> to vector<1x1x256xi1>
    %738 = vector.broadcast %737 : vector<1x1x256xi1> to vector<4x8x256xi1>
    %739 = vector.broadcast %cst_62 : f32 to vector<4x8x256xf32>
    %740 = arith.select %738, %736, %739 : vector<4x8x256xi1>, vector<4x8x256xf32>
    %741 = vector.extract_strided_slice %740 {offsets = [0, 0, 0], sizes = [1, 8, 256], strides = [1, 1, 1]} : vector<4x8x256xf32> to vector<1x8x256xf32>
    %742 = vector.shape_cast %741 : vector<1x8x256xf32> to vector<8x256xf32>
    %c20_63 = arith.constant 20 : index
    %743 = memref.load %arg4[%c20_63] : memref<36xf32, #tpu.memory_space<smem>>
    %744 = vector.broadcast %743 : f32 to vector<8x256xf32>
    %745 = arith.mulf %744, %742 : vector<8x256xf32>
    %746 = arith.addf %733, %745 : vector<8x256xf32>
    %747 = vector.extract_strided_slice %740 {offsets = [1, 0, 0], sizes = [1, 8, 256], strides = [1, 1, 1]} : vector<4x8x256xf32> to vector<1x8x256xf32>
    %748 = vector.shape_cast %747 : vector<1x8x256xf32> to vector<8x256xf32>
    %c21_64 = arith.constant 21 : index
    %749 = memref.load %arg4[%c21_64] : memref<36xf32, #tpu.memory_space<smem>>
    %750 = vector.broadcast %749 : f32 to vector<8x256xf32>
    %751 = arith.mulf %750, %748 : vector<8x256xf32>
    %752 = arith.addf %746, %751 : vector<8x256xf32>
    %753 = vector.extract_strided_slice %740 {offsets = [2, 0, 0], sizes = [1, 8, 256], strides = [1, 1, 1]} : vector<4x8x256xf32> to vector<1x8x256xf32>
    %754 = vector.shape_cast %753 : vector<1x8x256xf32> to vector<8x256xf32>
    %c22_65 = arith.constant 22 : index
    %755 = memref.load %arg4[%c22_65] : memref<36xf32, #tpu.memory_space<smem>>
    %756 = vector.broadcast %755 : f32 to vector<8x256xf32>
    %757 = arith.mulf %756, %754 : vector<8x256xf32>
    %758 = arith.addf %752, %757 : vector<8x256xf32>
    %759 = vector.extract_strided_slice %740 {offsets = [3, 0, 0], sizes = [1, 8, 256], strides = [1, 1, 1]} : vector<4x8x256xf32> to vector<1x8x256xf32>
    %760 = vector.shape_cast %759 : vector<1x8x256xf32> to vector<8x256xf32>
    %c23_66 = arith.constant 23 : index
    %761 = memref.load %arg4[%c23_66] : memref<36xf32, #tpu.memory_space<smem>>
    %762 = vector.broadcast %761 : f32 to vector<8x256xf32>
    %763 = arith.mulf %762, %760 : vector<8x256xf32>
    %764 = arith.addf %758, %763 : vector<8x256xf32>
    %cst_67 = arith.constant 0.000000e+00 : f32
    %765 = vector.broadcast %cst_67 : f32 to vector<4x8x15xf32>
    %766 = vector.extract_strided_slice %590 {offsets = [0, 0, 15], sizes = [4, 8, 241], strides = [1, 1, 1]} : vector<4x8x256xf32> to vector<4x8x241xf32>
    %767 = tpu.concatenate %766, %765 in 2 : vector<4x8x241xf32>, vector<4x8x15xf32> -> vector<4x8x256xf32>
    %cst_68 = arith.constant 0.000000e+00 : f32
    %768 = vector.shape_cast %26 : vector<1x1x256xi1> to vector<1x1x256xi1>
    %769 = vector.broadcast %768 : vector<1x1x256xi1> to vector<4x8x256xi1>
    %770 = vector.broadcast %cst_68 : f32 to vector<4x8x256xf32>
    %771 = arith.select %769, %767, %770 : vector<4x8x256xi1>, vector<4x8x256xf32>
    %772 = vector.extract_strided_slice %771 {offsets = [0, 0, 0], sizes = [1, 8, 256], strides = [1, 1, 1]} : vector<4x8x256xf32> to vector<1x8x256xf32>
    %773 = vector.shape_cast %772 : vector<1x8x256xf32> to vector<8x256xf32>
    %c24_69 = arith.constant 24 : index
    %774 = memref.load %arg4[%c24_69] : memref<36xf32, #tpu.memory_space<smem>>
    %775 = vector.broadcast %774 : f32 to vector<8x256xf32>
    %776 = arith.mulf %775, %773 : vector<8x256xf32>
    %777 = arith.addf %764, %776 : vector<8x256xf32>
    %778 = vector.extract_strided_slice %771 {offsets = [1, 0, 0], sizes = [1, 8, 256], strides = [1, 1, 1]} : vector<4x8x256xf32> to vector<1x8x256xf32>
    %779 = vector.shape_cast %778 : vector<1x8x256xf32> to vector<8x256xf32>
    %c25_70 = arith.constant 25 : index
    %780 = memref.load %arg4[%c25_70] : memref<36xf32, #tpu.memory_space<smem>>
    %781 = vector.broadcast %780 : f32 to vector<8x256xf32>
    %782 = arith.mulf %781, %779 : vector<8x256xf32>
    %783 = arith.addf %777, %782 : vector<8x256xf32>
    %784 = vector.extract_strided_slice %771 {offsets = [2, 0, 0], sizes = [1, 8, 256], strides = [1, 1, 1]} : vector<4x8x256xf32> to vector<1x8x256xf32>
    %785 = vector.shape_cast %784 : vector<1x8x256xf32> to vector<8x256xf32>
    %c26_71 = arith.constant 26 : index
    %786 = memref.load %arg4[%c26_71] : memref<36xf32, #tpu.memory_space<smem>>
    %787 = vector.broadcast %786 : f32 to vector<8x256xf32>
    %788 = arith.mulf %787, %785 : vector<8x256xf32>
    %789 = arith.addf %783, %788 : vector<8x256xf32>
    %790 = vector.extract_strided_slice %771 {offsets = [3, 0, 0], sizes = [1, 8, 256], strides = [1, 1, 1]} : vector<4x8x256xf32> to vector<1x8x256xf32>
    %791 = vector.shape_cast %790 : vector<1x8x256xf32> to vector<8x256xf32>
    %c27_72 = arith.constant 27 : index
    %792 = memref.load %arg4[%c27_72] : memref<36xf32, #tpu.memory_space<smem>>
    %793 = vector.broadcast %792 : f32 to vector<8x256xf32>
    %794 = arith.mulf %793, %791 : vector<8x256xf32>
    %795 = arith.addf %789, %794 : vector<8x256xf32>
    %cst_73 = arith.constant 0.000000e+00 : f32
    %796 = vector.broadcast %cst_73 : f32 to vector<4x8x16xf32>
    %797 = vector.extract_strided_slice %590 {offsets = [0, 0, 16], sizes = [4, 8, 240], strides = [1, 1, 1]} : vector<4x8x256xf32> to vector<4x8x240xf32>
    %798 = tpu.concatenate %797, %796 in 2 : vector<4x8x240xf32>, vector<4x8x16xf32> -> vector<4x8x256xf32>
    %799 = vector.extract_strided_slice %798 {offsets = [0, 0, 0], sizes = [1, 8, 256], strides = [1, 1, 1]} : vector<4x8x256xf32> to vector<1x8x256xf32>
    %800 = vector.shape_cast %799 : vector<1x8x256xf32> to vector<8x256xf32>
    %c28_74 = arith.constant 28 : index
    %801 = memref.load %arg4[%c28_74] : memref<36xf32, #tpu.memory_space<smem>>
    %802 = vector.broadcast %801 : f32 to vector<8x256xf32>
    %803 = arith.mulf %802, %800 : vector<8x256xf32>
    %804 = arith.addf %795, %803 : vector<8x256xf32>
    %805 = vector.extract_strided_slice %798 {offsets = [1, 0, 0], sizes = [1, 8, 256], strides = [1, 1, 1]} : vector<4x8x256xf32> to vector<1x8x256xf32>
    %806 = vector.shape_cast %805 : vector<1x8x256xf32> to vector<8x256xf32>
    %c29_75 = arith.constant 29 : index
    %807 = memref.load %arg4[%c29_75] : memref<36xf32, #tpu.memory_space<smem>>
    %808 = vector.broadcast %807 : f32 to vector<8x256xf32>
    %809 = arith.mulf %808, %806 : vector<8x256xf32>
    %810 = arith.addf %804, %809 : vector<8x256xf32>
    %811 = vector.extract_strided_slice %798 {offsets = [2, 0, 0], sizes = [1, 8, 256], strides = [1, 1, 1]} : vector<4x8x256xf32> to vector<1x8x256xf32>
    %812 = vector.shape_cast %811 : vector<1x8x256xf32> to vector<8x256xf32>
    %c30_76 = arith.constant 30 : index
    %813 = memref.load %arg4[%c30_76] : memref<36xf32, #tpu.memory_space<smem>>
    %814 = vector.broadcast %813 : f32 to vector<8x256xf32>
    %815 = arith.mulf %814, %812 : vector<8x256xf32>
    %816 = arith.addf %810, %815 : vector<8x256xf32>
    %817 = vector.extract_strided_slice %798 {offsets = [3, 0, 0], sizes = [1, 8, 256], strides = [1, 1, 1]} : vector<4x8x256xf32> to vector<1x8x256xf32>
    %818 = vector.shape_cast %817 : vector<1x8x256xf32> to vector<8x256xf32>
    %c31_77 = arith.constant 31 : index
    %819 = memref.load %arg4[%c31_77] : memref<36xf32, #tpu.memory_space<smem>>
    %820 = vector.broadcast %819 : f32 to vector<8x256xf32>
    %821 = arith.mulf %820, %818 : vector<8x256xf32>
    %822 = arith.addf %816, %821 : vector<8x256xf32>
    %cst_78 = arith.constant 0.000000e+00 : f32
    %823 = vector.broadcast %cst_78 : f32 to vector<4x8x17xf32>
    %824 = vector.extract_strided_slice %590 {offsets = [0, 0, 17], sizes = [4, 8, 239], strides = [1, 1, 1]} : vector<4x8x256xf32> to vector<4x8x239xf32>
    %825 = tpu.concatenate %824, %823 in 2 : vector<4x8x239xf32>, vector<4x8x17xf32> -> vector<4x8x256xf32>
    %cst_79 = arith.constant 0.000000e+00 : f32
    %826 = vector.shape_cast %35 : vector<1x1x256xi1> to vector<1x1x256xi1>
    %827 = vector.broadcast %826 : vector<1x1x256xi1> to vector<4x8x256xi1>
    %828 = vector.broadcast %cst_79 : f32 to vector<4x8x256xf32>
    %829 = arith.select %827, %825, %828 : vector<4x8x256xi1>, vector<4x8x256xf32>
    %830 = vector.extract_strided_slice %829 {offsets = [0, 0, 0], sizes = [1, 8, 256], strides = [1, 1, 1]} : vector<4x8x256xf32> to vector<1x8x256xf32>
    %831 = vector.shape_cast %830 : vector<1x8x256xf32> to vector<8x256xf32>
    %c32_80 = arith.constant 32 : index
    %832 = memref.load %arg4[%c32_80] : memref<36xf32, #tpu.memory_space<smem>>
    %833 = vector.broadcast %832 : f32 to vector<8x256xf32>
    %834 = arith.mulf %833, %831 : vector<8x256xf32>
    %835 = arith.addf %822, %834 : vector<8x256xf32>
    %836 = vector.extract_strided_slice %829 {offsets = [1, 0, 0], sizes = [1, 8, 256], strides = [1, 1, 1]} : vector<4x8x256xf32> to vector<1x8x256xf32>
    %837 = vector.shape_cast %836 : vector<1x8x256xf32> to vector<8x256xf32>
    %c33_81 = arith.constant 33 : index
    %838 = memref.load %arg4[%c33_81] : memref<36xf32, #tpu.memory_space<smem>>
    %839 = vector.broadcast %838 : f32 to vector<8x256xf32>
    %840 = arith.mulf %839, %837 : vector<8x256xf32>
    %841 = arith.addf %835, %840 : vector<8x256xf32>
    %842 = vector.extract_strided_slice %829 {offsets = [2, 0, 0], sizes = [1, 8, 256], strides = [1, 1, 1]} : vector<4x8x256xf32> to vector<1x8x256xf32>
    %843 = vector.shape_cast %842 : vector<1x8x256xf32> to vector<8x256xf32>
    %c34_82 = arith.constant 34 : index
    %844 = memref.load %arg4[%c34_82] : memref<36xf32, #tpu.memory_space<smem>>
    %845 = vector.broadcast %844 : f32 to vector<8x256xf32>
    %846 = arith.mulf %845, %843 : vector<8x256xf32>
    %847 = arith.addf %841, %846 : vector<8x256xf32>
    %848 = vector.extract_strided_slice %829 {offsets = [3, 0, 0], sizes = [1, 8, 256], strides = [1, 1, 1]} : vector<4x8x256xf32> to vector<1x8x256xf32>
    %849 = vector.shape_cast %848 : vector<1x8x256xf32> to vector<8x256xf32>
    %c35_83 = arith.constant 35 : index
    %850 = memref.load %arg4[%c35_83] : memref<36xf32, #tpu.memory_space<smem>>
    %851 = vector.broadcast %850 : f32 to vector<8x256xf32>
    %852 = arith.mulf %851, %849 : vector<8x256xf32>
    %853 = arith.addf %847, %852 : vector<8x256xf32>
    %c0_84 = arith.constant 0 : index
    %854 = memref.load %arg5[%c0_84] : memref<1xf32, #tpu.memory_space<smem>>
    %855 = vector.broadcast %854 : f32 to vector<8x256xf32>
    %856 = arith.addf %853, %855 : vector<8x256xf32>
    %cst_85 = arith.constant 0.000000e+00 : f32
    %857 = vector.broadcast %cst_85 : f32 to vector<8x256xf32>
    %858 = arith.maximumf %856, %857 : vector<8x256xf32>
    %859 = vector.shape_cast %858 : vector<8x256xf32> to vector<1x8x256xf32>
    %860 = vector.shape_cast %859 : vector<1x8x256xf32> to vector<8x256xf32>
    %cst_86 = arith.constant dense<0x7F800000> : vector<8xf32>
    %861 = vector.multi_reduction <minimumf>, %860, %cst_86 [1] : vector<8x256xf32> to vector<8xf32>
    %862 = vector.shape_cast %861 : vector<8xf32> to vector<8x1xf32>
    %cst_87 = arith.constant dense<0xFF800000> : vector<8xf32>
    %863 = vector.multi_reduction <maximumf>, %860, %cst_87 [1] : vector<8x256xf32> to vector<8xf32>
    %864 = vector.shape_cast %863 : vector<8xf32> to vector<8x1xf32>
    %865 = vector.broadcast %862 : vector<8x1xf32> to vector<8x256xf32>
    %866 = arith.subf %860, %865 : vector<8x256xf32>
    %867 = arith.subf %864, %862 : vector<8x1xf32>
    %cst_88 = arith.constant 9.99999993E-9 : f32
    %868 = vector.broadcast %cst_88 : f32 to vector<8x1xf32>
    %869 = arith.addf %867, %868 : vector<8x1xf32>
    %870 = vector.broadcast %869 : vector<8x1xf32> to vector<8x256xf32>
    %871 = arith.divf %866, %870 : vector<8x256xf32>
    %c0_89 = arith.constant 0 : index
    %c0_90 = arith.constant 0 : index
    %872 = vector.load %arg6[%c0_89, %c0_90] : memref<8x256xf32, #tpu.memory_space<vmem>>, vector<8x256xf32>
    tpu.vector_store %arg6[%c0_89, %c0_90], %871 {strides = array<i32>} : memref<8x256xf32, #tpu.memory_space<vmem>>, vector<8x256xf32>,
    return
  }
  func.func @transform_0(%arg0: i32) -> (i32, i32, i32) {
    %c0_i32 = arith.constant 0 : i32
    %c0_i32_0 = arith.constant 0 : i32
    %c0_i32_1 = arith.constant 0 : i32
    %c0_i32_2 = arith.constant 0 : i32
    return %c0_i32, %c0_i32_0, %c0_i32_1 : i32, i32, i32
  }
  func.func @transform_1(%arg0: i32) -> i32 {
    %c0_i32 = arith.constant 0 : i32
    %c0_i32_0 = arith.constant 0 : i32
    return %c0_i32 : i32
  }
  func.func @transform_2(%arg0: i32) -> i32 {
    %c0_i32 = arith.constant 0 : i32
    %c0_i32_0 = arith.constant 0 : i32
    return %c0_i32 : i32
  }
  func.func @transform_3(%arg0: i32) -> i32 {
    %c0_i32 = arith.constant 0 : i32
    %c0_i32_0 = arith.constant 0 : i32
    return %c0_i32 : i32
  }
  func.func @transform_4(%arg0: i32) -> i32 {
    %c0_i32 = arith.constant 0 : i32
    %c0_i32_0 = arith.constant 0 : i32
    return %c0_i32 : i32
  }
  func.func @transform_5(%arg0: i32) -> (i32, i32) {
    %c0_i32 = arith.constant 0 : i32
    %c0_i32_0 = arith.constant 0 : i32
    %c0_i32_1 = arith.constant 0 : i32
    return %c0_i32, %c0_i32_0 : i32, i32
  }
}

</mosaic_0001>

<llo_original>
// kernel: tpu_custom_call.1
$region0: #{tpu_custom_call.1}
  #allocation0 [shape = 'u32[]', space=smem, size = 0x4, offset = 0x4, fixed_abs, tag = 'smem constant byte address 0x4 - core index']
  #allocation1 [shape = 'u32[144,128]{1,0:T(1,128)}', space=vmem, size = 0x12000, scoped, tag = 'internal scratch']
  #allocation2 [shape = 'f32[1]{0:T(128)S(6)}', space=smem, size = 0x200, scoped, tag = 'scoped memory for tpu_custom_call.1']
  %s0 = inlined_call_operand.hbm [shape: f32[3,8,256], index: 0, kind: input, shape index: {}]
  %s1 = inlined_call_operand.vmem [shape: f32[108], index: 1, kind: input, shape index: {}]
  %s2 = inlined_call_operand.vmem [shape: f32[4], index: 2, kind: input, shape index: {}]
  %s3 = inlined_call_operand.vmem [shape: f32[36], index: 3, kind: input, shape index: {}]
  %s4 = inlined_call_operand.<no memory space> [shape: f32[1], index: 4, kind: input, shape index: {}]
  %s5 = inlined_call_operand.hbm [shape: f32[8,256], index: 5, kind: output, shape index: {}]
  %s6 = sld [smem:[#allocation0]]
  $region46: #{tpu_custom_call.1} parent=0
    _
  %s8 = ssub.s32 1, %s6
  %s9 = scalar_select 0, %s8, %s6
  %10 = sst [smem:[#allocation2]] %s4
  $region1: #{tpu_custom_call.1} parent=0
    #allocation3 [shape = 'u8[24576]{0}', space=vmem, size = 0x6000, scoped, tag = 'input window, operand 0, single buffered']
    #allocation4 [shape = 's32[1]{0}', space=sflag, size = 0x4, scoped, tag = 'scoped memory for tpu_custom_call.1']
    #allocation5 [shape = 's32[1]{0}', space=sflag, size = 0x4, scoped, tag = 'scoped memory for tpu_custom_call.1']
    #allocation6 [shape = 's32[1]{0}', space=sflag, size = 0x4, scoped, tag = 'scoped memory for tpu_custom_call.1']
    #allocation7 [shape = 'u8[512]{0}', space=smem, size = 0x200, scoped, tag = 'input window, operand 1, single buffered']
    #allocation8 [shape = 'u8[512]{0}', space=smem, size = 0x200, scoped, tag = 'input window, operand 2, single buffered']
    #allocation9 [shape = 's32[1]{0}', space=sflag, size = 0x4, scoped, tag = 'scoped memory for tpu_custom_call.1']
    #allocation10 [shape = 'u8[512]{0}', space=smem, size = 0x200, scoped, tag = 'input window, operand 3, single buffered']
    #allocation11 [shape = 'u8[8192]{0}', space=vmem, size = 0x2000, scoped, tag = 'output window, operand 0, single buffered']
    %11 = vsyncpa [#allocation4], 0
    %12 = vsyncpa [#allocation6], 0
    %13 = vsyncpa [#allocation9], 0
    %14 = vsyncpa [#allocation5], 0
    // Predicated region
    $region2: #{tpu_custom_call.1} parent=1 // pred_check
      _
    $region3: #{tpu_custom_call.1} parent=1 // pred_check_branch
      %16 = sbr.rel (0) target = $region5
    $region4: #{tpu_custom_call.1} parent=1 // pred_region
      %s18 = ssub.s32 768, 768
      %19 = vsyncadd [#allocation4], %s18
      %s20 = sshll.u32 [#allocation3], 4
      %s21 = int_to_ptr.vmem [resolvable:$true] %s20
      %26 = dma.hbm_to_vmem [thread:$0]  %s0, 768, %s21, [#allocation4], 256, 256, 16
    $region5: #{tpu_custom_call.1} parent=1 // pred_fallthru
      _
    // Predicated region
    $region6: #{tpu_custom_call.1} parent=1 // pred_check
      _
    $region7: #{tpu_custom_call.1} parent=1 // pred_check_branch
      %28 = sbr.rel (0) target = $region9
    $region8: #{tpu_custom_call.1} parent=1 // pred_region
      %s30 = ssub.s32 16, 16
      %31 = vsyncadd [#allocation6], %s30
      %s33 = sshll.u32 %s1, 4
      %s34 = int_to_ptr.vmem [resolvable:$true] %s33
      %36 = dma.vmem_to_smem %s34, 16, [#allocation7], [#allocation6]
    $region9: #{tpu_custom_call.1} parent=1 // pred_fallthru
      _
    // Predicated region
    $region10: #{tpu_custom_call.1} parent=1 // pred_check
      _
    $region11: #{tpu_custom_call.1} parent=1 // pred_check_branch
      %38 = sbr.rel (0) target = $region13
    $region12: #{tpu_custom_call.1} parent=1 // pred_region
      %s40 = ssub.s32 16, 16
      %41 = vsyncadd [#allocation9], %s40
      %s43 = sshll.u32 %s2, 4
      %s44 = int_to_ptr.vmem [resolvable:$true] %s43
      %46 = dma.vmem_to_smem %s44, 16, [#allocation8], [#allocation9]
    $region13: #{tpu_custom_call.1} parent=1 // pred_fallthru
      _
    // Predicated region
    $region14: #{tpu_custom_call.1} parent=1 // pred_check
      _
    $region15: #{tpu_custom_call.1} parent=1 // pred_check_branch
      %48 = sbr.rel (0) target = $region17
    $region16: #{tpu_custom_call.1} parent=1 // pred_region
      %s50 = ssub.s32 16, 16
      %51 = vsyncadd [#allocation9], %s50
      %s53 = sshll.u32 %s3, 4
      %s54 = int_to_ptr.vmem [resolvable:$true] %s53
      %56 = dma.vmem_to_smem %s54, 16, [#allocation10], [#allocation9]
    $region17: #{tpu_custom_call.1} parent=1 // pred_fallthru
      _
    // Predicated region
    $region18: #{tpu_custom_call.1} parent=1 // pred_check
      _
    $region19: #{tpu_custom_call.1} parent=1 // pred_check_branch
      %58 = sbr.rel (0) target = $region21
    $region20: #{tpu_custom_call.1} parent=1 // pred_region
      _
    $region21: #{tpu_custom_call.1} parent=1 // pred_fallthru
      _
    // Predicated region
    $region22: #{tpu_custom_call.1} parent=1 // pred_check
      _
    $region23: #{tpu_custom_call.1} parent=1 // pred_check_branch
      %60 = sbr.rel (0) target = $region25
    $region24: #{tpu_custom_call.1} parent=1 // pred_region
      %61 = dma.done [#allocation4], 768
    $region25: #{tpu_custom_call.1} parent=1 // pred_fallthru
      _
    // Predicated region
    $region26: #{tpu_custom_call.1} parent=1 // pred_check
      _
    $region27: #{tpu_custom_call.1} parent=1 // pred_check_branch
      %63 = sbr.rel (0) target = $region29
    $region28: #{tpu_custom_call.1} parent=1 // pred_region
      %64 = dma.done [#allocation6], 16
    $region29: #{tpu_custom_call.1} parent=1 // pred_fallthru
      _
    // Predicated region
    $region30: #{tpu_custom_call.1} parent=1 // pred_check
      _
    $region31: #{tpu_custom_call.1} parent=1 // pred_check_branch
      %66 = sbr.rel (0) target = $region33
    $region32: #{tpu_custom_call.1} parent=1 // pred_region
      %67 = dma.done [#allocation9], 16
    $region33: #{tpu_custom_call.1} parent=1 // pred_fallthru
      _
    // Predicated region
    $region34: #{tpu_custom_call.1} parent=1 // pred_check
      _
    $region35: #{tpu_custom_call.1} parent=1 // pred_check_branch
      %69 = sbr.rel (0) target = $region37
    $region36: #{tpu_custom_call.1} parent=1 // pred_region
      %70 = dma.done [#allocation9], 16
    $region37: #{tpu_custom_call.1} parent=1 // pred_fallthru
      _
    %71 = sfence
    %v72 = vld [vmem:[#allocation3] sm:$0xff]
    %v73 = vld [vmem:[#allocation3 + $0x8] sm:$0xff]
    %v74 = vld [vmem:[#allocation3 + $0x10] sm:$0xff]
    %v75 = vld [vmem:[#allocation3 + $0x18] sm:$0xff]
    %v76 = vld [vmem:[#allocation3 + $0x20] sm:$0xff]
    %v77 = vld [vmem:[#allocation3 + $0x28] sm:$0xff]
    %v78 = vlaneseq
    %v79 = vand.u32 %v78, 127
    %v80 = vadd.s32 %v79, 128
    %vm81 = vcmp.lt.s32.totalorder %v79, 0
    %v82 = vsub.s32 0, %v79
    %v83 = vsel %vm81, %v82, %v79
    %v84 = vshrl.u32 %v83, 4
    %v85 = vand.u32 %v83, 15
    %v86 = vsub.s32 0, %v85
    %v87 = vsel %vm81, %v86, %v85
    %vm88 = vcmp.lt.s32.totalorder %v80, 0
    %v89 = vsub.s32 0, %v80
    %v90 = vsel %vm88, %v89, %v80
    %v91 = vshrl.u32 %v90, 4
    %v92 = vand.u32 %v90, 15
    %v93 = vsub.s32 0, %v92
    %v94 = vsel %vm88, %v93, %v92
    %vm95 = vcmp.ne.s32.totalorder %v87, 0
    %vm96 = vcmp.ne.s32.totalorder %v94, 0
    %vm97 = vcmp.lt.s32.totalorder %v87, 0
    %vm98 = vcmp.lt.s32.totalorder %v94, 0
    %vm99 = vmand %vm97, %vm95
    %vm100 = vmand %vm98, %vm96
    %v101 = vadd.s32 %v87, 16
    %v102 = vadd.s32 %v94, 16
    %v103 = vsel %vm99, %v101, %v87
    %v104 = vsel %vm100, %v102, %v94
    %v105 = vadd.s32 %v103, 4294967295
    %v106 = vadd.s32 %v104, 4294967295
    %vm107 = vcmp.ge.s32.totalorder %v105, 0
    %vm108 = vcmp.ge.s32.totalorder %v106, 0
    %vm109 = vcmp.lt.s32.totalorder %v105, 16
    %vm110 = vcmp.lt.s32.totalorder %v106, 16
    %vm111 = vmand %vm107, %vm109
    %vm112 = vmand %vm108, %vm110
    %v113 = vadd.s32 %v103, 1
    %v114 = vadd.s32 %v104, 1
    %vm115 = vcmp.ge.s32.totalorder %v113, 0
    %vm116 = vcmp.ge.s32.totalorder %v114, 0
    %vm117 = vcmp.lt.s32.totalorder %v113, 16
    %vm118 = vcmp.lt.s32.totalorder %v114, 16
    %vm119 = vmand %vm115, %vm117
    %vm120 = vmand %vm116, %vm118
    %127 = vrot.lane.b32.xlu0 %v72, 17
    %v128 = vpop.permute.xlu0 %127
    %129 = vrot.lane.b32.xlu0 %v73, 17
    %v130 = vpop.permute.xlu0 %129
    %131 = vrot.lane.b32.xlu0 %v74, 17
    %v132 = vpop.permute.xlu0 %131
    %133 = vrot.lane.b32.xlu0 %v75, 17
    %v134 = vpop.permute.xlu0 %133
    %135 = vrot.lane.b32.xlu0 %v76, 17
    %v136 = vpop.permute.xlu0 %135
    %137 = vrot.lane.b32.xlu0 %v77, 17
    %v138 = vpop.permute.xlu0 %137
    %vm139 = vcmask 138240
    %v140 = vsel %vm139, %v128, %v130
    %v141 = vsel %vm139, %v132, %v134
    %v142 = vsel %vm139, %v136, %v138
    %v149 = vsel %vm139, 0.0, %v128
    %v150 = vsel %vm139, 0.0, %v132
    %v151 = vsel %vm139, 0.0, %v136
    %v152 = vsel %vm111, 1, 0
    %v153 = vsel %vm112, 1, 0
    %vm154 = vcmp.eq.s32.totalorder %v152, 1
    %vm155 = vcmp.eq.s32.totalorder %v153, 1
    %v156 = vsel %vm154, %v149, 0.0
    %v157 = vsel %vm155, %v140, 0.0
    %v158 = vsel %vm154, %v150, 0.0
    %v159 = vsel %vm155, %v141, 0.0
    %v160 = vsel %vm154, %v151, 0.0
    %v161 = vsel %vm155, %v142, 0.0
    %s162 = sld [smem:[#allocation7]]
    %v163 = vstv %s162
    %v164 = vmul.f32 %v163, %v156
    %v165 = vmul.f32 %v163, %v157
    %s166 = sld [smem:[#allocation7 + $0x1]]
    %v167 = vstv %s166
    %v168 = vmul.f32 %v167, %v156
    %v169 = vmul.f32 %v167, %v157
    %s170 = sld [smem:[#allocation7 + $0x2]]
    %v171 = vstv %s170
    %v172 = vmul.f32 %v171, %v156
    %v173 = vmul.f32 %v171, %v157
    %s174 = sld [smem:[#allocation7 + $0x3]]
    %v175 = vstv %s174
    %v176 = vmul.f32 %v175, %v156
    %v177 = vmul.f32 %v175, %v157
    %s178 = sld [smem:[#allocation7 + $0x4]]
    %v179 = vstv %s178
    %v180 = vmul.f32 %v179, %v158
    %v181 = vmul.f32 %v179, %v159
    %v182 = vadd.f32 %v164, %v180
    %v183 = vadd.f32 %v165, %v181
    %s184 = sld [smem:[#allocation7 + $0x5]]
    %v185 = vstv %s184
    %v186 = vmul.f32 %v185, %v158
    %v187 = vmul.f32 %v185, %v159
    %v188 = vadd.f32 %v168, %v186
    %v189 = vadd.f32 %v169, %v187
    %s190 = sld [smem:[#allocation7 + $0x6]]
    %v191 = vstv %s190
    %v192 = vmul.f32 %v191, %v158
    %v193 = vmul.f32 %v191, %v159
    %v194 = vadd.f32 %v172, %v192
    %v195 = vadd.f32 %v173, %v193
    %s196 = sld [smem:[#allocation7 + $0x7]]
    %v197 = vstv %s196
    %v198 = vmul.f32 %v197, %v158
    %v199 = vmul.f32 %v197, %v159
    %v200 = vadd.f32 %v176, %v198
    %v201 = vadd.f32 %v177, %v199
    %s202 = sld [smem:[#allocation7 + $0x8]]
    %v203 = vstv %s202
    %v204 = vmul.f32 %v203, %v160
    %v205 = vmul.f32 %v203, %v161
    %v206 = vadd.f32 %v182, %v204
    %v207 = vadd.f32 %v183, %v205
    %s208 = sld [smem:[#allocation7 + $0x9]]
    %v209 = vstv %s208
    %v210 = vmul.f32 %v209, %v160
    %v211 = vmul.f32 %v209, %v161
    %v212 = vadd.f32 %v188, %v210
    %v213 = vadd.f32 %v189, %v211
    %s214 = sld [smem:[#allocation7 + $0xa]]
    %v215 = vstv %s214
    %v216 = vmul.f32 %v215, %v160
    %v217 = vmul.f32 %v215, %v161
    %v218 = vadd.f32 %v194, %v216
    %v219 = vadd.f32 %v195, %v217
    %s220 = sld [smem:[#allocation7 + $0xb]]
    %v221 = vstv %s220
    %v222 = vmul.f32 %v221, %v160
    %v223 = vmul.f32 %v221, %v161
    %v224 = vadd.f32 %v200, %v222
    %v225 = vadd.f32 %v201, %v223
    %226 = vrot.lane.b32.xlu0 %v72, 16
    %v227 = vpop.permute.xlu0 %226
    %228 = vrot.lane.b32.xlu0 %v73, 16
    %v229 = vpop.permute.xlu0 %228
    %230 = vrot.lane.b32.xlu0 %v74, 16
    %v231 = vpop.permute.xlu0 %230
    %232 = vrot.lane.b32.xlu0 %v75, 16
    %v233 = vpop.permute.xlu0 %232
    %234 = vrot.lane.b32.xlu0 %v76, 16
    %v235 = vpop.permute.xlu0 %234
    %236 = vrot.lane.b32.xlu0 %v77, 16
    %v237 = vpop.permute.xlu0 %236
    %vm238 = vcmask 130048
    %v239 = vsel %vm238, %v227, %v229
    %v240 = vsel %vm238, %v231, %v233
    %v241 = vsel %vm238, %v235, %v237
    %v248 = vsel %vm238, 0.0, %v227
    %v249 = vsel %vm238, 0.0, %v231
    %v250 = vsel %vm238, 0.0, %v235
    %s251 = sld [smem:[#allocation7 + $0xc]]
    %v252 = vstv %s251
    %v253 = vmul.f32 %v252, %v248
    %v254 = vmul.f32 %v252, %v239
    %v255 = vadd.f32 %v206, %v253
    %v256 = vadd.f32 %v207, %v254
    %s257 = sld [smem:[#allocation7 + $0xd]]
    %v258 = vstv %s257
    %v259 = vmul.f32 %v258, %v248
    %v260 = vmul.f32 %v258, %v239
    %v261 = vadd.f32 %v212, %v259
    %v262 = vadd.f32 %v213, %v260
    %s263 = sld [smem:[#allocation7 + $0xe]]
    %v264 = vstv %s263
    %v265 = vmul.f32 %v264, %v248
    %v266 = vmul.f32 %v264, %v239
    %v267 = vadd.f32 %v218, %v265
    %v268 = vadd.f32 %v219, %v266
    %s269 = sld [smem:[#allocation7 + $0xf]]
    %v270 = vstv %s269
    %v271 = vmul.f32 %v270, %v248
    %v272 = vmul.f32 %v270, %v239
    %v273 = vadd.f32 %v224, %v271
    %v274 = vadd.f32 %v225, %v272
    %s275 = sld [smem:[#allocation7 + $0x10]]
    %v276 = vstv %s275
    %v277 = vmul.f32 %v276, %v249
    %v278 = vmul.f32 %v276, %v240
    %v279 = vadd.f32 %v255, %v277
    %v280 = vadd.f32 %v256, %v278
    %s281 = sld [smem:[#allocation7 + $0x11]]
    %v282 = vstv %s281
    %v283 = vmul.f32 %v282, %v249
    %v284 = vmul.f32 %v282, %v240
    %v285 = vadd.f32 %v261, %v283
    %v286 = vadd.f32 %v262, %v284
    %s287 = sld [smem:[#allocation7 + $0x12]]
    %v288 = vstv %s287
    %v289 = vmul.f32 %v288, %v249
    %v290 = vmul.f32 %v288, %v240
    %v291 = vadd.f32 %v267, %v289
    %v292 = vadd.f32 %v268, %v290
    %s293 = sld [smem:[#allocation7 + $0x13]]
    %v294 = vstv %s293
    %v295 = vmul.f32 %v294, %v249
    %v296 = vmul.f32 %v294, %v240
    %v297 = vadd.f32 %v273, %v295
    %v298 = vadd.f32 %v274, %v296
    %s299 = sld [smem:[#allocation7 + $0x14]]
    %v300 = vstv %s299
    %v301 = vmul.f32 %v300, %v250
    %v302 = vmul.f32 %v300, %v241
    %v303 = vadd.f32 %v279, %v301
    %v304 = vadd.f32 %v280, %v302
    %s305 = sld [smem:[#allocation7 + $0x15]]
    %v306 = vstv %s305
    %v307 = vmul.f32 %v306, %v250
    %v308 = vmul.f32 %v306, %v241
    %v309 = vadd.f32 %v285, %v307
    %v310 = vadd.f32 %v286, %v308
    %s311 = sld [smem:[#allocation7 + $0x16]]
    %v312 = vstv %s311
    %v313 = vmul.f32 %v312, %v250
    %v314 = vmul.f32 %v312, %v241
    %v315 = vadd.f32 %v291, %v313
    %v316 = vadd.f32 %v292, %v314
    %s317 = sld [smem:[#allocation7 + $0x17]]
    %v318 = vstv %s317
    %v319 = vmul.f32 %v318, %v250
    %v320 = vmul.f32 %v318, %v241
    %v321 = vadd.f32 %v297, %v319
    %v322 = vadd.f32 %v298, %v320
    %323 = vrot.lane.b32.xlu0 %v72, 15
    %v324 = vpop.permute.xlu0 %323
    %325 = vrot.lane.b32.xlu0 %v73, 15
    %v326 = vpop.permute.xlu0 %325
    %327 = vrot.lane.b32.xlu0 %v74, 15
    %v328 = vpop.permute.xlu0 %327
    %329 = vrot.lane.b32.xlu0 %v75, 15
    %v330 = vpop.permute.xlu0 %329
    %331 = vrot.lane.b32.xlu0 %v76, 15
    %v332 = vpop.permute.xlu0 %331
    %333 = vrot.lane.b32.xlu0 %v77, 15
    %v334 = vpop.permute.xlu0 %333
    %vm335 = vcmask 121856
    %v336 = vsel %vm335, %v324, %v326
    %v337 = vsel %vm335, %v328, %v330
    %v338 = vsel %vm335, %v332, %v334
    %v345 = vsel %vm335, 0.0, %v324
    %v346 = vsel %vm335, 0.0, %v328
    %v347 = vsel %vm335, 0.0, %v332
    %v348 = vsel %vm119, 1, 0
    %v349 = vsel %vm120, 1, 0
    %vm350 = vcmp.eq.s32.totalorder %v348, 1
    %vm351 = vcmp.eq.s32.totalorder %v349, 1
    %v352 = vsel %vm350, %v345, 0.0
    %v353 = vsel %vm351, %v336, 0.0
    %v354 = vsel %vm350, %v346, 0.0
    %v355 = vsel %vm351, %v337, 0.0
    %v356 = vsel %vm350, %v347, 0.0
    %v357 = vsel %vm351, %v338, 0.0
    %s358 = sld [smem:[#allocation7 + $0x18]]
    %v359 = vstv %s358
    %v360 = vmul.f32 %v359, %v352
    %v361 = vmul.f32 %v359, %v353
    %v362 = vadd.f32 %v303, %v360
    %v363 = vadd.f32 %v304, %v361
    %s364 = sld [smem:[#allocation7 + $0x19]]
    %v365 = vstv %s364
    %v366 = vmul.f32 %v365, %v352
    %v367 = vmul.f32 %v365, %v353
    %v368 = vadd.f32 %v309, %v366
    %v369 = vadd.f32 %v310, %v367
    %s370 = sld [smem:[#allocation7 + $0x1a]]
    %v371 = vstv %s370
    %v372 = vmul.f32 %v371, %v352
    %v373 = vmul.f32 %v371, %v353
    %v374 = vadd.f32 %v315, %v372
    %v375 = vadd.f32 %v316, %v373
    %s376 = sld [smem:[#allocation7 + $0x1b]]
    %v377 = vstv %s376
    %v378 = vmul.f32 %v377, %v352
    %v379 = vmul.f32 %v377, %v353
    %v380 = vadd.f32 %v321, %v378
    %v381 = vadd.f32 %v322, %v379
    %s382 = sld [smem:[#allocation7 + $0x1c]]
    %v383 = vstv %s382
    %v384 = vmul.f32 %v383, %v354
    %v385 = vmul.f32 %v383, %v355
    %v386 = vadd.f32 %v362, %v384
    %v387 = vadd.f32 %v363, %v385
    %s388 = sld [smem:[#allocation7 + $0x1d]]
    %v389 = vstv %s388
    %v390 = vmul.f32 %v389, %v354
    %v391 = vmul.f32 %v389, %v355
    %v392 = vadd.f32 %v368, %v390
    %v393 = vadd.f32 %v369, %v391
    %s394 = sld [smem:[#allocation7 + $0x1e]]
    %v395 = vstv %s394
    %v396 = vmul.f32 %v395, %v354
    %v397 = vmul.f32 %v395, %v355
    %v398 = vadd.f32 %v374, %v396
    %v399 = vadd.f32 %v375, %v397
    %s400 = sld [smem:[#allocation7 + $0x1f]]
    %v401 = vstv %s400
    %v402 = vmul.f32 %v401, %v354
    %v403 = vmul.f32 %v401, %v355
    %v404 = vadd.f32 %v380, %v402
    %v405 = vadd.f32 %v381, %v403
    %s406 = sld [smem:[#allocation7 + $0x20]]
    %v407 = vstv %s406
    %v408 = vmul.f32 %v407, %v356
    %v409 = vmul.f32 %v407, %v357
    %v410 = vadd.f32 %v386, %v408
    %v411 = vadd.f32 %v387, %v409
    %s412 = sld [smem:[#allocation7 + $0x21]]
    %v413 = vstv %s412
    %v414 = vmul.f32 %v413, %v356
    %v415 = vmul.f32 %v413, %v357
    %v416 = vadd.f32 %v392, %v414
    %v417 = vadd.f32 %v393, %v415
    %s418 = sld [smem:[#allocation7 + $0x22]]
    %v419 = vstv %s418
    %v420 = vmul.f32 %v419, %v356
    %v421 = vmul.f32 %v419, %v357
    %v422 = vadd.f32 %v398, %v420
    %v423 = vadd.f32 %v399, %v421
    %s424 = sld [smem:[#allocation7 + $0x23]]
    %v425 = vstv %s424
    %v426 = vmul.f32 %v425, %v356
    %v427 = vmul.f32 %v425, %v357
    %v428 = vadd.f32 %v404, %v426
    %v429 = vadd.f32 %v405, %v427
    %430 = vrot.lane.b32.xlu0 %v72, 1
    %v431 = vpop.permute.xlu0 %430
    %432 = vrot.lane.b32.xlu0 %v73, 1
    %v433 = vpop.permute.xlu0 %432
    %434 = vrot.lane.b32.xlu0 %v74, 1
    %v435 = vpop.permute.xlu0 %434
    %436 = vrot.lane.b32.xlu0 %v75, 1
    %v437 = vpop.permute.xlu0 %436
    %438 = vrot.lane.b32.xlu0 %v76, 1
    %v439 = vpop.permute.xlu0 %438
    %440 = vrot.lane.b32.xlu0 %v77, 1
    %v441 = vpop.permute.xlu0 %440
    %vm442 = vcmask 7168
    %v443 = vsel %vm442, %v431, %v433
    %v444 = vsel %vm442, %v435, %v437
    %v445 = vsel %vm442, %v439, %v441
    %v452 = vsel %vm442, 0.0, %v431
    %v453 = vsel %vm442, 0.0, %v435
    %v454 = vsel %vm442, 0.0, %v439
    %v455 = vsel %vm154, %v452, 0.0
    %v456 = vsel %vm155, %v443, 0.0
    %v457 = vsel %vm154, %v453, 0.0
    %v458 = vsel %vm155, %v444, 0.0
    %v459 = vsel %vm154, %v454, 0.0
    %v460 = vsel %vm155, %v445, 0.0
    %s461 = sld [smem:[#allocation7 + $0x24]]
    %v462 = vstv %s461
    %v463 = vmul.f32 %v462, %v455
    %v464 = vmul.f32 %v462, %v456
    %v465 = vadd.f32 %v410, %v463
    %v466 = vadd.f32 %v411, %v464
    %s467 = sld [smem:[#allocation7 + $0x25]]
    %v468 = vstv %s467
    %v469 = vmul.f32 %v468, %v455
    %v470 = vmul.f32 %v468, %v456
    %v471 = vadd.f32 %v416, %v469
    %v472 = vadd.f32 %v417, %v470
    %s473 = sld [smem:[#allocation7 + $0x26]]
    %v474 = vstv %s473
    %v475 = vmul.f32 %v474, %v455
    %v476 = vmul.f32 %v474, %v456
    %v477 = vadd.f32 %v422, %v475
    %v478 = vadd.f32 %v423, %v476
    %s479 = sld [smem:[#allocation7 + $0x27]]
    %v480 = vstv %s479
    %v481 = vmul.f32 %v480, %v455
    %v482 = vmul.f32 %v480, %v456
    %v483 = vadd.f32 %v428, %v481
    %v484 = vadd.f32 %v429, %v482
    %s485 = sld [smem:[#allocation7 + $0x28]]
    %v486 = vstv %s485
    %v487 = vmul.f32 %v486, %v457
    %v488 = vmul.f32 %v486, %v458
    %v489 = vadd.f32 %v465, %v487
    %v490 = vadd.f32 %v466, %v488
    %s491 = sld [smem:[#allocation7 + $0x29]]
    %v492 = vstv %s491
    %v493 = vmul.f32 %v492, %v457
    %v494 = vmul.f32 %v492, %v458
    %v495 = vadd.f32 %v471, %v493
    %v496 = vadd.f32 %v472, %v494
    %s497 = sld [smem:[#allocation7 + $0x2a]]
    %v498 = vstv %s497
    %v499 = vmul.f32 %v498, %v457
    %v500 = vmul.f32 %v498, %v458
    %v501 = vadd.f32 %v477, %v499
    %v502 = vadd.f32 %v478, %v500
    %s503 = sld [smem:[#allocation7 + $0x2b]]
    %v504 = vstv %s503
    %v505 = vmul.f32 %v504, %v457
    %v506 = vmul.f32 %v504, %v458
    %v507 = vadd.f32 %v483, %v505
    %v508 = vadd.f32 %v484, %v506
    %s509 = sld [smem:[#allocation7 + $0x2c]]
    %v510 = vstv %s509
    %v511 = vmul.f32 %v510, %v459
    %v512 = vmul.f32 %v510, %v460
    %v513 = vadd.f32 %v489, %v511
    %v514 = vadd.f32 %v490, %v512
    %s515 = sld [smem:[#allocation7 + $0x2d]]
    %v516 = vstv %s515
    %v517 = vmul.f32 %v516, %v459
    %v518 = vmul.f32 %v516, %v460
    %v519 = vadd.f32 %v495, %v517
    %v520 = vadd.f32 %v496, %v518
    %s521 = sld [smem:[#allocation7 + $0x2e]]
    %v522 = vstv %s521
    %v523 = vmul.f32 %v522, %v459
    %v524 = vmul.f32 %v522, %v460
    %v525 = vadd.f32 %v501, %v523
    %v526 = vadd.f32 %v502, %v524
    %s527 = sld [smem:[#allocation7 + $0x2f]]
    %v528 = vstv %s527
    %v529 = vmul.f32 %v528, %v459
    %v530 = vmul.f32 %v528, %v460
    %v531 = vadd.f32 %v507, %v529
    %v532 = vadd.f32 %v508, %v530
    %s533 = sld [smem:[#allocation7 + $0x30]]
    %v534 = vstv %s533
    %v535 = vmul.f32 %v534, %v72
    %v536 = vmul.f32 %v534, %v73
    %v537 = vadd.f32 %v513, %v535
    %v538 = vadd.f32 %v514, %v536
    %s539 = sld [smem:[#allocation7 + $0x31]]
    %v540 = vstv %s539
    %v541 = vmul.f32 %v540, %v72
    %v542 = vmul.f32 %v540, %v73
    %v543 = vadd.f32 %v519, %v541
    %v544 = vadd.f32 %v520, %v542
    %s545 = sld [smem:[#allocation7 + $0x32]]
    %v546 = vstv %s545
    %v547 = vmul.f32 %v546, %v72
    %v548 = vmul.f32 %v546, %v73
    %v549 = vadd.f32 %v525, %v547
    %v550 = vadd.f32 %v526, %v548
    %s551 = sld [smem:[#allocation7 + $0x33]]
    %v552 = vstv %s551
    %v553 = vmul.f32 %v552, %v72
    %v554 = vmul.f32 %v552, %v73
    %v555 = vadd.f32 %v531, %v553
    %v556 = vadd.f32 %v532, %v554
    %s557 = sld [smem:[#allocation7 + $0x34]]
    %v558 = vstv %s557
    %v559 = vmul.f32 %v558, %v74
    %v560 = vmul.f32 %v558, %v75
    %v561 = vadd.f32 %v537, %v559
    %v562 = vadd.f32 %v538, %v560
    %s563 = sld [smem:[#allocation7 + $0x35]]
    %v564 = vstv %s563
    %v565 = vmul.f32 %v564, %v74
    %v566 = vmul.f32 %v564, %v75
    %v567 = vadd.f32 %v543, %v565
    %v568 = vadd.f32 %v544, %v566
    %s569 = sld [smem:[#allocation7 + $0x36]]
    %v570 = vstv %s569
    %v571 = vmul.f32 %v570, %v74
    %v572 = vmul.f32 %v570, %v75
    %v573 = vadd.f32 %v549, %v571
    %v574 = vadd.f32 %v550, %v572
    %s575 = sld [smem:[#allocation7 + $0x37]]
    %v576 = vstv %s575
    %v577 = vmul.f32 %v576, %v74
    %v578 = vmul.f32 %v576, %v75
    %v579 = vadd.f32 %v555, %v577
    %v580 = vadd.f32 %v556, %v578
    %s581 = sld [smem:[#allocation7 + $0x38]]
    %v582 = vstv %s581
    %v583 = vmul.f32 %v582, %v76
    %v584 = vmul.f32 %v582, %v77
    %v585 = vadd.f32 %v561, %v583
    %v586 = vadd.f32 %v562, %v584
    %s587 = sld [smem:[#allocation7 + $0x39]]
    %v588 = vstv %s587
    %v589 = vmul.f32 %v588, %v76
    %v590 = vmul.f32 %v588, %v77
    %v591 = vadd.f32 %v567, %v589
    %v592 = vadd.f32 %v568, %v590
    %s593 = sld [smem:[#allocation7 + $0x3a]]
    %v594 = vstv %s593
    %v595 = vmul.f32 %v594, %v76
    %v596 = vmul.f32 %v594, %v77
    %v597 = vadd.f32 %v573, %v595
    %v598 = vadd.f32 %v574, %v596
    %s599 = sld [smem:[#allocation7 + $0x3b]]
    %v600 = vstv %s599
    %v601 = vmul.f32 %v600, %v76
    %v602 = vmul.f32 %v600, %v77
    %v603 = vadd.f32 %v579, %v601
    %v604 = vadd.f32 %v580, %v602
    %605 = vrot.lane.b32.xlu0 %v72, 127
    %v606 = vpop.permute.xlu0 %605
    %607 = vrot.lane.b32.xlu0 %v73, 127
    %v608 = vpop.permute.xlu0 %607
    %609 = vrot.lane.b32.xlu0 %v74, 127
    %v610 = vpop.permute.xlu0 %609
    %611 = vrot.lane.b32.xlu0 %v75, 127
    %v612 = vpop.permute.xlu0 %611
    %613 = vrot.lane.b32.xlu0 %v76, 127
    %v614 = vpop.permute.xlu0 %613
    %615 = vrot.lane.b32.xlu0 %v77, 127
    %v616 = vpop.permute.xlu0 %615
    %vm617 = vcmask 1039360
    %v618 = vsel %vm617, %v606, %v608
    %v619 = vsel %vm617, %v610, %v612
    %v620 = vsel %vm617, %v614, %v616
    %v627 = vsel %vm617, %v608, 0.0
    %v628 = vsel %vm617, %v612, 0.0
    %v629 = vsel %vm617, %v616, 0.0
    %v630 = vsel %vm350, %v618, 0.0
    %v631 = vsel %vm351, %v627, 0.0
    %v632 = vsel %vm350, %v619, 0.0
    %v633 = vsel %vm351, %v628, 0.0
    %v634 = vsel %vm350, %v620, 0.0
    %v635 = vsel %vm351, %v629, 0.0
    %s636 = sld [smem:[#allocation7 + $0x3c]]
    %v637 = vstv %s636
    %v638 = vmul.f32 %v637, %v630
    %v639 = vmul.f32 %v637, %v631
    %v640 = vadd.f32 %v585, %v638
    %v641 = vadd.f32 %v586, %v639
    %s642 = sld [smem:[#allocation7 + $0x3d]]
    %v643 = vstv %s642
    %v644 = vmul.f32 %v643, %v630
    %v645 = vmul.f32 %v643, %v631
    %v646 = vadd.f32 %v591, %v644
    %v647 = vadd.f32 %v592, %v645
    %s648 = sld [smem:[#allocation7 + $0x3e]]
    %v649 = vstv %s648
    %v650 = vmul.f32 %v649, %v630
    %v651 = vmul.f32 %v649, %v631
    %v652 = vadd.f32 %v597, %v650
    %v653 = vadd.f32 %v598, %v651
    %s654 = sld [smem:[#allocation7 + $0x3f]]
    %v655 = vstv %s654
    %v656 = vmul.f32 %v655, %v630
    %v657 = vmul.f32 %v655, %v631
    %v658 = vadd.f32 %v603, %v656
    %v659 = vadd.f32 %v604, %v657
    %s660 = sld [smem:[#allocation7 + $0x40]]
    %v661 = vstv %s660
    %v662 = vmul.f32 %v661, %v632
    %v663 = vmul.f32 %v661, %v633
    %v664 = vadd.f32 %v640, %v662
    %v665 = vadd.f32 %v641, %v663
    %s666 = sld [smem:[#allocation7 + $0x41]]
    %v667 = vstv %s666
    %v668 = vmul.f32 %v667, %v632
    %v669 = vmul.f32 %v667, %v633
    %v670 = vadd.f32 %v646, %v668
    %v671 = vadd.f32 %v647, %v669
    %s672 = sld [smem:[#allocation7 + $0x42]]
    %v673 = vstv %s672
    %v674 = vmul.f32 %v673, %v632
    %v675 = vmul.f32 %v673, %v633
    %v676 = vadd.f32 %v652, %v674
    %v677 = vadd.f32 %v653, %v675
    %s678 = sld [smem:[#allocation7 + $0x43]]
    %v679 = vstv %s678
    %v680 = vmul.f32 %v679, %v632
    %v681 = vmul.f32 %v679, %v633
    %v682 = vadd.f32 %v658, %v680
    %v683 = vadd.f32 %v659, %v681
    %s684 = sld [smem:[#allocation7 + $0x44]]
    %v685 = vstv %s684
    %v686 = vmul.f32 %v685, %v634
    %v687 = vmul.f32 %v685, %v635
    %v688 = vadd.f32 %v664, %v686
    %v689 = vadd.f32 %v665, %v687
    %s690 = sld [smem:[#allocation7 + $0x45]]
    %v691 = vstv %s690
    %v692 = vmul.f32 %v691, %v634
    %v693 = vmul.f32 %v691, %v635
    %v694 = vadd.f32 %v670, %v692
    %v695 = vadd.f32 %v671, %v693
    %s696 = sld [smem:[#allocation7 + $0x46]]
    %v697 = vstv %s696
    %v698 = vmul.f32 %v697, %v634
    %v699 = vmul.f32 %v697, %v635
    %v700 = vadd.f32 %v676, %v698
    %v701 = vadd.f32 %v677, %v699
    %s702 = sld [smem:[#allocation7 + $0x47]]
    %v703 = vstv %s702
    %v704 = vmul.f32 %v703, %v634
    %v705 = vmul.f32 %v703, %v635
    %v706 = vadd.f32 %v682, %v704
    %v707 = vadd.f32 %v683, %v705
    %708 = vrot.lane.b32.xlu0 %v72, 113
    %v709 = vpop.permute.xlu0 %708
    %710 = vrot.lane.b32.xlu0 %v73, 113
    %v711 = vpop.permute.xlu0 %710
    %712 = vrot.lane.b32.xlu0 %v74, 113
    %v713 = vpop.permute.xlu0 %712
    %714 = vrot.lane.b32.xlu0 %v75, 113
    %v715 = vpop.permute.xlu0 %714
    %716 = vrot.lane.b32.xlu0 %v76, 113
    %v717 = vpop.permute.xlu0 %716
    %718 = vrot.lane.b32.xlu0 %v77, 113
    %v719 = vpop.permute.xlu0 %718
    %vm720 = vcmask 924672
    %v721 = vsel %vm720, %v709, %v711
    %v722 = vsel %vm720, %v713, %v715
    %v723 = vsel %vm720, %v717, %v719
    %v730 = vsel %vm720, %v711, 0.0
    %v731 = vsel %vm720, %v715, 0.0
    %v732 = vsel %vm720, %v719, 0.0
    %v733 = vsel %vm154, %v721, 0.0
    %v734 = vsel %vm155, %v730, 0.0
    %v735 = vsel %vm154, %v722, 0.0
    %v736 = vsel %vm155, %v731, 0.0
    %v737 = vsel %vm154, %v723, 0.0
    %v738 = vsel %vm155, %v732, 0.0
    %s739 = sld [smem:[#allocation7 + $0x48]]
    %v740 = vstv %s739
    %v741 = vmul.f32 %v740, %v733
    %v742 = vmul.f32 %v740, %v734
    %v743 = vadd.f32 %v688, %v741
    %v744 = vadd.f32 %v689, %v742
    %s745 = sld [smem:[#allocation7 + $0x49]]
    %v746 = vstv %s745
    %v747 = vmul.f32 %v746, %v733
    %v748 = vmul.f32 %v746, %v734
    %v749 = vadd.f32 %v694, %v747
    %v750 = vadd.f32 %v695, %v748
    %s751 = sld [smem:[#allocation7 + $0x4a]]
    %v752 = vstv %s751
    %v753 = vmul.f32 %v752, %v733
    %v754 = vmul.f32 %v752, %v734
    %v755 = vadd.f32 %v700, %v753
    %v756 = vadd.f32 %v701, %v754
    %s757 = sld [smem:[#allocation7 + $0x4b]]
    %v758 = vstv %s757
    %v759 = vmul.f32 %v758, %v733
    %v760 = vmul.f32 %v758, %v734
    %v761 = vadd.f32 %v706, %v759
    %v762 = vadd.f32 %v707, %v760
    %s763 = sld [smem:[#allocation7 + $0x4c]]
    %v764 = vstv %s763
    %v765 = vmul.f32 %v764, %v735
    %v766 = vmul.f32 %v764, %v736
    %v767 = vadd.f32 %v743, %v765
    %v768 = vadd.f32 %v744, %v766
    %s769 = sld [smem:[#allocation7 + $0x4d]]
    %v770 = vstv %s769
    %v771 = vmul.f32 %v770, %v735
    %v772 = vmul.f32 %v770, %v736
    %v773 = vadd.f32 %v749, %v771
    %v774 = vadd.f32 %v750, %v772
    %s775 = sld [smem:[#allocation7 + $0x4e]]
    %v776 = vstv %s775
    %v777 = vmul.f32 %v776, %v735
    %v778 = vmul.f32 %v776, %v736
    %v779 = vadd.f32 %v755, %v777
    %v780 = vadd.f32 %v756, %v778
    %s781 = sld [smem:[#allocation7 + $0x4f]]
    %v782 = vstv %s781
    %v783 = vmul.f32 %v782, %v735
    %v784 = vmul.f32 %v782, %v736
    %v785 = vadd.f32 %v761, %v783
    %v786 = vadd.f32 %v762, %v784
    %s787 = sld [smem:[#allocation7 + $0x50]]
    %v788 = vstv %s787
    %v789 = vmul.f32 %v788, %v737
    %v790 = vmul.f32 %v788, %v738
    %v791 = vadd.f32 %v767, %v789
    %v792 = vadd.f32 %v768, %v790
    %s793 = sld [smem:[#allocation7 + $0x51]]
    %v794 = vstv %s793
    %v795 = vmul.f32 %v794, %v737
    %v796 = vmul.f32 %v794, %v738
    %v797 = vadd.f32 %v773, %v795
    %v798 = vadd.f32 %v774, %v796
    %s799 = sld [smem:[#allocation7 + $0x52]]
    %v800 = vstv %s799
    %v801 = vmul.f32 %v800, %v737
    %v802 = vmul.f32 %v800, %v738
    %v803 = vadd.f32 %v779, %v801
    %v804 = vadd.f32 %v780, %v802
    %s805 = sld [smem:[#allocation7 + $0x53]]
    %v806 = vstv %s805
    %v807 = vmul.f32 %v806, %v737
    %v808 = vmul.f32 %v806, %v738
    %v809 = vadd.f32 %v785, %v807
    %v810 = vadd.f32 %v786, %v808
    %811 = vrot.lane.b32.xlu0 %v72, 112
    %v812 = vpop.permute.xlu0 %811
    %813 = vrot.lane.b32.xlu0 %v73, 112
    %v814 = vpop.permute.xlu0 %813
    %815 = vrot.lane.b32.xlu0 %v74, 112
    %v816 = vpop.permute.xlu0 %815
    %817 = vrot.lane.b32.xlu0 %v75, 112
    %v818 = vpop.permute.xlu0 %817
    %819 = vrot.lane.b32.xlu0 %v76, 112
    %v820 = vpop.permute.xlu0 %819
    %821 = vrot.lane.b32.xlu0 %v77, 112
    %v822 = vpop.permute.xlu0 %821
    %vm823 = vcmask 916480
    %v824 = vsel %vm823, %v812, %v814
    %v825 = vsel %vm823, %v816, %v818
    %v826 = vsel %vm823, %v820, %v822
    %v833 = vsel %vm823, %v814, 0.0
    %v834 = vsel %vm823, %v818, 0.0
    %v835 = vsel %vm823, %v822, 0.0
    %s836 = sld [smem:[#allocation7 + $0x54]]
    %v837 = vstv %s836
    %v838 = vmul.f32 %v837, %v824
    %v839 = vmul.f32 %v837, %v833
    %v840 = vadd.f32 %v791, %v838
    %v841 = vadd.f32 %v792, %v839
    %s842 = sld [smem:[#allocation7 + $0x55]]
    %v843 = vstv %s842
    %v844 = vmul.f32 %v843, %v824
    %v845 = vmul.f32 %v843, %v833
    %v846 = vadd.f32 %v797, %v844
    %v847 = vadd.f32 %v798, %v845
    %s848 = sld [smem:[#allocation7 + $0x56]]
    %v849 = vstv %s848
    %v850 = vmul.f32 %v849, %v824
    %v851 = vmul.f32 %v849, %v833
    %v852 = vadd.f32 %v803, %v850
    %v853 = vadd.f32 %v804, %v851
    %s854 = sld [smem:[#allocation7 + $0x57]]
    %v855 = vstv %s854
    %v856 = vmul.f32 %v855, %v824
    %v857 = vmul.f32 %v855, %v833
    %v858 = vadd.f32 %v809, %v856
    %v859 = vadd.f32 %v810, %v857
    %s860 = sld [smem:[#allocation7 + $0x58]]
    %v861 = vstv %s860
    %v862 = vmul.f32 %v861, %v825
    %v863 = vmul.f32 %v861, %v834
    %v864 = vadd.f32 %v840, %v862
    %v865 = vadd.f32 %v841, %v863
    %s866 = sld [smem:[#allocation7 + $0x59]]
    %v867 = vstv %s866
    %v868 = vmul.f32 %v867, %v825
    %v869 = vmul.f32 %v867, %v834
    %v870 = vadd.f32 %v846, %v868
    %v871 = vadd.f32 %v847, %v869
    %s872 = sld [smem:[#allocation7 + $0x5a]]
    %v873 = vstv %s872
    %v874 = vmul.f32 %v873, %v825
    %v875 = vmul.f32 %v873, %v834
    %v876 = vadd.f32 %v852, %v874
    %v877 = vadd.f32 %v853, %v875
    %s878 = sld [smem:[#allocation7 + $0x5b]]
    %v879 = vstv %s878
    %v880 = vmul.f32 %v879, %v825
    %v881 = vmul.f32 %v879, %v834
    %v882 = vadd.f32 %v858, %v880
    %v883 = vadd.f32 %v859, %v881
    %s884 = sld [smem:[#allocation7 + $0x5c]]
    %v885 = vstv %s884
    %v886 = vmul.f32 %v885, %v826
    %v887 = vmul.f32 %v885, %v835
    %v888 = vadd.f32 %v864, %v886
    %v889 = vadd.f32 %v865, %v887
    %s890 = sld [smem:[#allocation7 + $0x5d]]
    %v891 = vstv %s890
    %v892 = vmul.f32 %v891, %v826
    %v893 = vmul.f32 %v891, %v835
    %v894 = vadd.f32 %v870, %v892
    %v895 = vadd.f32 %v871, %v893
    %s896 = sld [smem:[#allocation7 + $0x5e]]
    %v897 = vstv %s896
    %v898 = vmul.f32 %v897, %v826
    %v899 = vmul.f32 %v897, %v835
    %v900 = vadd.f32 %v876, %v898
    %v901 = vadd.f32 %v877, %v899
    %s902 = sld [smem:[#allocation7 + $0x5f]]
    %v903 = vstv %s902
    %v904 = vmul.f32 %v903, %v826
    %v905 = vmul.f32 %v903, %v835
    %v906 = vadd.f32 %v882, %v904
    %v907 = vadd.f32 %v883, %v905
    %908 = vrot.lane.b32.xlu0 %v72, 111
    %v909 = vpop.permute.xlu0 %908
    %910 = vrot.lane.b32.xlu0 %v73, 111
    %v911 = vpop.permute.xlu0 %910
    %912 = vrot.lane.b32.xlu0 %v74, 111
    %v913 = vpop.permute.xlu0 %912
    %914 = vrot.lane.b32.xlu0 %v75, 111
    %v915 = vpop.permute.xlu0 %914
    %916 = vrot.lane.b32.xlu0 %v76, 111
    %v917 = vpop.permute.xlu0 %916
    %918 = vrot.lane.b32.xlu0 %v77, 111
    %v919 = vpop.permute.xlu0 %918
    %vm920 = vcmask 908288
    %v921 = vsel %vm920, %v909, %v911
    %v922 = vsel %vm920, %v913, %v915
    %v923 = vsel %vm920, %v917, %v919
    %v930 = vsel %vm920, %v911, 0.0
    %v931 = vsel %vm920, %v915, 0.0
    %v932 = vsel %vm920, %v919, 0.0
    %v933 = vsel %vm350, %v921, 0.0
    %v934 = vsel %vm351, %v930, 0.0
    %v935 = vsel %vm350, %v922, 0.0
    %v936 = vsel %vm351, %v931, 0.0
    %v937 = vsel %vm350, %v923, 0.0
    %v938 = vsel %vm351, %v932, 0.0
    %s939 = sld [smem:[#allocation7 + $0x60]]
    %v940 = vstv %s939
    %v941 = vmul.f32 %v940, %v933
    %v942 = vmul.f32 %v940, %v934
    %v943 = vadd.f32 %v888, %v941
    %v944 = vadd.f32 %v889, %v942
    %s945 = sld [smem:[#allocation7 + $0x61]]
    %v946 = vstv %s945
    %v947 = vmul.f32 %v946, %v933
    %v948 = vmul.f32 %v946, %v934
    %v949 = vadd.f32 %v894, %v947
    %v950 = vadd.f32 %v895, %v948
    %s951 = sld [smem:[#allocation7 + $0x62]]
    %v952 = vstv %s951
    %v953 = vmul.f32 %v952, %v933
    %v954 = vmul.f32 %v952, %v934
    %v955 = vadd.f32 %v900, %v953
    %v956 = vadd.f32 %v901, %v954
    %s957 = sld [smem:[#allocation7 + $0x63]]
    %v958 = vstv %s957
    %v959 = vmul.f32 %v958, %v933
    %v960 = vmul.f32 %v958, %v934
    %v961 = vadd.f32 %v906, %v959
    %v962 = vadd.f32 %v907, %v960
    %s963 = sld [smem:[#allocation7 + $0x64]]
    %v964 = vstv %s963
    %v965 = vmul.f32 %v964, %v935
    %v966 = vmul.f32 %v964, %v936
    %v967 = vadd.f32 %v943, %v965
    %v968 = vadd.f32 %v944, %v966
    %s969 = sld [smem:[#allocation7 + $0x65]]
    %v970 = vstv %s969
    %v971 = vmul.f32 %v970, %v935
    %v972 = vmul.f32 %v970, %v936
    %v973 = vadd.f32 %v949, %v971
    %v974 = vadd.f32 %v950, %v972
    %s975 = sld [smem:[#allocation7 + $0x66]]
    %v976 = vstv %s975
    %v977 = vmul.f32 %v976, %v935
    %v978 = vmul.f32 %v976, %v936
    %v979 = vadd.f32 %v955, %v977
    %v980 = vadd.f32 %v956, %v978
    %s981 = sld [smem:[#allocation7 + $0x67]]
    %v982 = vstv %s981
    %v983 = vmul.f32 %v982, %v935
    %v984 = vmul.f32 %v982, %v936
    %v985 = vadd.f32 %v961, %v983
    %v986 = vadd.f32 %v962, %v984
    %s987 = sld [smem:[#allocation7 + $0x68]]
    %v988 = vstv %s987
    %v989 = vmul.f32 %v988, %v937
    %v990 = vmul.f32 %v988, %v938
    %v991 = vadd.f32 %v967, %v989
    %v992 = vadd.f32 %v968, %v990
    %s993 = sld [smem:[#allocation7 + $0x69]]
    %v994 = vstv %s993
    %v995 = vmul.f32 %v994, %v937
    %v996 = vmul.f32 %v994, %v938
    %v997 = vadd.f32 %v973, %v995
    %v998 = vadd.f32 %v974, %v996
    %s999 = sld [smem:[#allocation7 + $0x6a]]
    %v1000 = vstv %s999
    %v1001 = vmul.f32 %v1000, %v937
    %v1002 = vmul.f32 %v1000, %v938
    %v1003 = vadd.f32 %v979, %v1001
    %v1004 = vadd.f32 %v980, %v1002
    %s1005 = sld [smem:[#allocation7 + $0x6b]]
    %v1006 = vstv %s1005
    %v1007 = vmul.f32 %v1006, %v937
    %v1008 = vmul.f32 %v1006, %v938
    %v1009 = vadd.f32 %v985, %v1007
    %v1010 = vadd.f32 %v986, %v1008
    %s1011 = sld [smem:[#allocation8]]
    %v1012 = vstv %s1011
    %v1013 = vadd.f32 %v991, %v1012
    %v1014 = vadd.f32 %v992, %v1012
    %v1015 = vmax.f32 %v1013, 0.0
    %v1016 = vmax.f32 %v1014, 0.0
    %s1017 = sld [smem:[#allocation8 + $0x1]]
    %v1018 = vstv %s1017
    %v1019 = vadd.f32 %v997, %v1018
    %v1020 = vadd.f32 %v998, %v1018
    %v1021 = vmax.f32 %v1019, 0.0
    %v1022 = vmax.f32 %v1020, 0.0
    %s1023 = sld [smem:[#allocation8 + $0x2]]
    %v1024 = vstv %s1023
    %v1025 = vadd.f32 %v1003, %v1024
    %v1026 = vadd.f32 %v1004, %v1024
    %v1027 = vmax.f32 %v1025, 0.0
    %v1028 = vmax.f32 %v1026, 0.0
    %s1029 = sld [smem:[#allocation8 + $0x3]]
    %v1030 = vstv %s1029
    %v1031 = vadd.f32 %v1009, %v1030
    %v1032 = vadd.f32 %v1010, %v1030
    %v1033 = vmax.f32 %v1031, 0.0
    %v1034 = vmax.f32 %v1032, 0.0
    %1043 = vrot.lane.b32.xlu0 %v1015, 17
    %v1044 = vpop.permute.xlu0 %1043
    %1045 = vrot.lane.b32.xlu0 %v1016, 17
    %v1046 = vpop.permute.xlu0 %1045
    %1047 = vrot.lane.b32.xlu0 %v1021, 17
    %v1048 = vpop.permute.xlu0 %1047
    %1049 = vrot.lane.b32.xlu0 %v1022, 17
    %v1050 = vpop.permute.xlu0 %1049
    %1051 = vrot.lane.b32.xlu0 %v1027, 17
    %v1052 = vpop.permute.xlu0 %1051
    %1053 = vrot.lane.b32.xlu0 %v1028, 17
    %v1054 = vpop.permute.xlu0 %1053
    %1055 = vrot.lane.b32.xlu0 %v1033, 17
    %v1056 = vpop.permute.xlu0 %1055
    %1057 = vrot.lane.b32.xlu0 %v1034, 17
    %v1058 = vpop.permute.xlu0 %1057
    %v1059 = vsel %vm139, %v1044, %v1046
    %v1060 = vsel %vm139, %v1048, %v1050
    %v1061 = vsel %vm139, %v1052, %v1054
    %v1062 = vsel %vm139, %v1056, %v1058
    %v1071 = vsel %vm139, 0.0, %v1044
    %v1072 = vsel %vm139, 0.0, %v1048
    %v1073 = vsel %vm139, 0.0, %v1052
    %v1074 = vsel %vm139, 0.0, %v1056
    %v1075 = vsel %vm154, %v1071, 0.0
    %v1076 = vsel %vm155, %v1059, 0.0
    %v1077 = vsel %vm154, %v1072, 0.0
    %v1078 = vsel %vm155, %v1060, 0.0
    %v1079 = vsel %vm154, %v1073, 0.0
    %v1080 = vsel %vm155, %v1061, 0.0
    %v1081 = vsel %vm154, %v1074, 0.0
    %v1082 = vsel %vm155, %v1062, 0.0
    %s1083 = sld [smem:[#allocation10]]
    %v1084 = vstv %s1083
    %v1085 = vmul.f32 %v1084, %v1075
    %v1086 = vmul.f32 %v1084, %v1076
    %s1087 = sld [smem:[#allocation10 + $0x1]]
    %v1088 = vstv %s1087
    %v1089 = vmul.f32 %v1088, %v1077
    %v1090 = vmul.f32 %v1088, %v1078
    %v1091 = vadd.f32 %v1085, %v1089
    %v1092 = vadd.f32 %v1086, %v1090
    %s1093 = sld [smem:[#allocation10 + $0x2]]
    %v1094 = vstv %s1093
    %v1095 = vmul.f32 %v1094, %v1079
    %v1096 = vmul.f32 %v1094, %v1080
    %v1097 = vadd.f32 %v1091, %v1095
    %v1098 = vadd.f32 %v1092, %v1096
    %s1099 = sld [smem:[#allocation10 + $0x3]]
    %v1100 = vstv %s1099
    %v1101 = vmul.f32 %v1100, %v1081
    %v1102 = vmul.f32 %v1100, %v1082
    %v1103 = vadd.f32 %v1097, %v1101
    %v1104 = vadd.f32 %v1098, %v1102
    %1105 = vrot.lane.b32.xlu0 %v1015, 16
    %v1106 = vpop.permute.xlu0 %1105
    %1107 = vrot.lane.b32.xlu0 %v1016, 16
    %v1108 = vpop.permute.xlu0 %1107
    %1109 = vrot.lane.b32.xlu0 %v1021, 16
    %v1110 = vpop.permute.xlu0 %1109
    %1111 = vrot.lane.b32.xlu0 %v1022, 16
    %v1112 = vpop.permute.xlu0 %1111
    %1113 = vrot.lane.b32.xlu0 %v1027, 16
    %v1114 = vpop.permute.xlu0 %1113
    %1115 = vrot.lane.b32.xlu0 %v1028, 16
    %v1116 = vpop.permute.xlu0 %1115
    %1117 = vrot.lane.b32.xlu0 %v1033, 16
    %v1118 = vpop.permute.xlu0 %1117
    %1119 = vrot.lane.b32.xlu0 %v1034, 16
    %v1120 = vpop.permute.xlu0 %1119
    %v1121 = vsel %vm238, %v1106, %v1108
    %v1122 = vsel %vm238, %v1110, %v1112
    %v1123 = vsel %vm238, %v1114, %v1116
    %v1124 = vsel %vm238, %v1118, %v1120
    %v1133 = vsel %vm238, 0.0, %v1106
    %v1134 = vsel %vm238, 0.0, %v1110
    %v1135 = vsel %vm238, 0.0, %v1114
    %v1136 = vsel %vm238, 0.0, %v1118
    %s1137 = sld [smem:[#allocation10 + $0x4]]
    %v1138 = vstv %s1137
    %v1139 = vmul.f32 %v1138, %v1133
    %v1140 = vmul.f32 %v1138, %v1121
    %v1141 = vadd.f32 %v1103, %v1139
    %v1142 = vadd.f32 %v1104, %v1140
    %s1143 = sld [smem:[#allocation10 + $0x5]]
    %v1144 = vstv %s1143
    %v1145 = vmul.f32 %v1144, %v1134
    %v1146 = vmul.f32 %v1144, %v1122
    %v1147 = vadd.f32 %v1141, %v1145
    %v1148 = vadd.f32 %v1142, %v1146
    %s1149 = sld [smem:[#allocation10 + $0x6]]
    %v1150 = vstv %s1149
    %v1151 = vmul.f32 %v1150, %v1135
    %v1152 = vmul.f32 %v1150, %v1123
    %v1153 = vadd.f32 %v1147, %v1151
    %v1154 = vadd.f32 %v1148, %v1152
    %s1155 = sld [smem:[#allocation10 + $0x7]]
    %v1156 = vstv %s1155
    %v1157 = vmul.f32 %v1156, %v1136
    %v1158 = vmul.f32 %v1156, %v1124
    %v1159 = vadd.f32 %v1153, %v1157
    %v1160 = vadd.f32 %v1154, %v1158
    %1161 = vrot.lane.b32.xlu0 %v1015, 15
    %v1162 = vpop.permute.xlu0 %1161
    %1163 = vrot.lane.b32.xlu0 %v1016, 15
    %v1164 = vpop.permute.xlu0 %1163
    %1165 = vrot.lane.b32.xlu0 %v1021, 15
    %v1166 = vpop.permute.xlu0 %1165
    %1167 = vrot.lane.b32.xlu0 %v1022, 15
    %v1168 = vpop.permute.xlu0 %1167
    %1169 = vrot.lane.b32.xlu0 %v1027, 15
    %v1170 = vpop.permute.xlu0 %1169
    %1171 = vrot.lane.b32.xlu0 %v1028, 15
    %v1172 = vpop.permute.xlu0 %1171
    %1173 = vrot.lane.b32.xlu0 %v1033, 15
    %v1174 = vpop.permute.xlu0 %1173
    %1175 = vrot.lane.b32.xlu0 %v1034, 15
    %v1176 = vpop.permute.xlu0 %1175
    %v1177 = vsel %vm335, %v1162, %v1164
    %v1178 = vsel %vm335, %v1166, %v1168
    %v1179 = vsel %vm335, %v1170, %v1172
    %v1180 = vsel %vm335, %v1174, %v1176
    %v1189 = vsel %vm335, 0.0, %v1162
    %v1190 = vsel %vm335, 0.0, %v1166
    %v1191 = vsel %vm335, 0.0, %v1170
    %v1192 = vsel %vm335, 0.0, %v1174
    %v1193 = vsel %vm350, %v1189, 0.0
    %v1194 = vsel %vm351, %v1177, 0.0
    %v1195 = vsel %vm350, %v1190, 0.0
    %v1196 = vsel %vm351, %v1178, 0.0
    %v1197 = vsel %vm350, %v1191, 0.0
    %v1198 = vsel %vm351, %v1179, 0.0
    %v1199 = vsel %vm350, %v1192, 0.0
    %v1200 = vsel %vm351, %v1180, 0.0
    %s1201 = sld [smem:[#allocation10 + $0x8]]
    %v1202 = vstv %s1201
    %v1203 = vmul.f32 %v1202, %v1193
    %v1204 = vmul.f32 %v1202, %v1194
    %v1205 = vadd.f32 %v1159, %v1203
    %v1206 = vadd.f32 %v1160, %v1204
    %s1207 = sld [smem:[#allocation10 + $0x9]]
    %v1208 = vstv %s1207
    %v1209 = vmul.f32 %v1208, %v1195
    %v1210 = vmul.f32 %v1208, %v1196
    %v1211 = vadd.f32 %v1205, %v1209
    %v1212 = vadd.f32 %v1206, %v1210
    %s1213 = sld [smem:[#allocation10 + $0xa]]
    %v1214 = vstv %s1213
    %v1215 = vmul.f32 %v1214, %v1197
    %v1216 = vmul.f32 %v1214, %v1198
    %v1217 = vadd.f32 %v1211, %v1215
    %v1218 = vadd.f32 %v1212, %v1216
    %s1219 = sld [smem:[#allocation10 + $0xb]]
    %v1220 = vstv %s1219
    %v1221 = vmul.f32 %v1220, %v1199
    %v1222 = vmul.f32 %v1220, %v1200
    %v1223 = vadd.f32 %v1217, %v1221
    %v1224 = vadd.f32 %v1218, %v1222
    %1225 = vrot.lane.b32.xlu0 %v1015, 1
    %v1226 = vpop.permute.xlu0 %1225
    %1227 = vrot.lane.b32.xlu0 %v1016, 1
    %v1228 = vpop.permute.xlu0 %1227
    %1229 = vrot.lane.b32.xlu0 %v1021, 1
    %v1230 = vpop.permute.xlu0 %1229
    %1231 = vrot.lane.b32.xlu0 %v1022, 1
    %v1232 = vpop.permute.xlu0 %1231
    %1233 = vrot.lane.b32.xlu0 %v1027, 1
    %v1234 = vpop.permute.xlu0 %1233
    %1235 = vrot.lane.b32.xlu0 %v1028, 1
    %v1236 = vpop.permute.xlu0 %1235
    %1237 = vrot.lane.b32.xlu0 %v1033, 1
    %v1238 = vpop.permute.xlu0 %1237
    %1239 = vrot.lane.b32.xlu0 %v1034, 1
    %v1240 = vpop.permute.xlu0 %1239
    %v1241 = vsel %vm442, %v1226, %v1228
    %v1242 = vsel %vm442, %v1230, %v1232
    %v1243 = vsel %vm442, %v1234, %v1236
    %v1244 = vsel %vm442, %v1238, %v1240
    %v1253 = vsel %vm442, 0.0, %v1226
    %v1254 = vsel %vm442, 0.0, %v1230
    %v1255 = vsel %vm442, 0.0, %v1234
    %v1256 = vsel %vm442, 0.0, %v1238
    %v1257 = vsel %vm154, %v1253, 0.0
    %v1258 = vsel %vm155, %v1241, 0.0
    %v1259 = vsel %vm154, %v1254, 0.0
    %v1260 = vsel %vm155, %v1242, 0.0
    %v1261 = vsel %vm154, %v1255, 0.0
    %v1262 = vsel %vm155, %v1243, 0.0
    %v1263 = vsel %vm154, %v1256, 0.0
    %v1264 = vsel %vm155, %v1244, 0.0
    %s1265 = sld [smem:[#allocation10 + $0xc]]
    %v1266 = vstv %s1265
    %v1267 = vmul.f32 %v1266, %v1257
    %v1268 = vmul.f32 %v1266, %v1258
    %v1269 = vadd.f32 %v1223, %v1267
    %v1270 = vadd.f32 %v1224, %v1268
    %s1271 = sld [smem:[#allocation10 + $0xd]]
    %v1272 = vstv %s1271
    %v1273 = vmul.f32 %v1272, %v1259
    %v1274 = vmul.f32 %v1272, %v1260
    %v1275 = vadd.f32 %v1269, %v1273
    %v1276 = vadd.f32 %v1270, %v1274
    %s1277 = sld [smem:[#allocation10 + $0xe]]
    %v1278 = vstv %s1277
    %v1279 = vmul.f32 %v1278, %v1261
    %v1280 = vmul.f32 %v1278, %v1262
    %v1281 = vadd.f32 %v1275, %v1279
    %v1282 = vadd.f32 %v1276, %v1280
    %s1283 = sld [smem:[#allocation10 + $0xf]]
    %v1284 = vstv %s1283
    %v1285 = vmul.f32 %v1284, %v1263
    %v1286 = vmul.f32 %v1284, %v1264
    %v1287 = vadd.f32 %v1281, %v1285
    %v1288 = vadd.f32 %v1282, %v1286
    %s1289 = sld [smem:[#allocation10 + $0x10]]
    %v1290 = vstv %s1289
    %v1291 = vmul.f32 %v1290, %v1015
    %v1292 = vmul.f32 %v1290, %v1016
    %v1293 = vadd.f32 %v1287, %v1291
    %v1294 = vadd.f32 %v1288, %v1292
    %s1295 = sld [smem:[#allocation10 + $0x11]]
    %v1296 = vstv %s1295
    %v1297 = vmul.f32 %v1296, %v1021
    %v1298 = vmul.f32 %v1296, %v1022
    %v1299 = vadd.f32 %v1293, %v1297
    %v1300 = vadd.f32 %v1294, %v1298
    %s1301 = sld [smem:[#allocation10 + $0x12]]
    %v1302 = vstv %s1301
    %v1303 = vmul.f32 %v1302, %v1027
    %v1304 = vmul.f32 %v1302, %v1028
    %v1305 = vadd.f32 %v1299, %v1303
    %v1306 = vadd.f32 %v1300, %v1304
    %s1307 = sld [smem:[#allocation10 + $0x13]]
    %v1308 = vstv %s1307
    %v1309 = vmul.f32 %v1308, %v1033
    %v1310 = vmul.f32 %v1308, %v1034
    %v1311 = vadd.f32 %v1305, %v1309
    %v1312 = vadd.f32 %v1306, %v1310
    %1313 = vrot.lane.b32.xlu0 %v1015, 127
    %v1314 = vpop.permute.xlu0 %1313
    %1315 = vrot.lane.b32.xlu0 %v1016, 127
    %v1316 = vpop.permute.xlu0 %1315
    %1317 = vrot.lane.b32.xlu0 %v1021, 127
    %v1318 = vpop.permute.xlu0 %1317
    %1319 = vrot.lane.b32.xlu0 %v1022, 127
    %v1320 = vpop.permute.xlu0 %1319
    %1321 = vrot.lane.b32.xlu0 %v1027, 127
    %v1322 = vpop.permute.xlu0 %1321
    %1323 = vrot.lane.b32.xlu0 %v1028, 127
    %v1324 = vpop.permute.xlu0 %1323
    %1325 = vrot.lane.b32.xlu0 %v1033, 127
    %v1326 = vpop.permute.xlu0 %1325
    %1327 = vrot.lane.b32.xlu0 %v1034, 127
    %v1328 = vpop.permute.xlu0 %1327
    %v1329 = vsel %vm617, %v1314, %v1316
    %v1330 = vsel %vm617, %v1318, %v1320
    %v1331 = vsel %vm617, %v1322, %v1324
    %v1332 = vsel %vm617, %v1326, %v1328
    %v1341 = vsel %vm617, %v1316, 0.0
    %v1342 = vsel %vm617, %v1320, 0.0
    %v1343 = vsel %vm617, %v1324, 0.0
    %v1344 = vsel %vm617, %v1328, 0.0
    %v1345 = vsel %vm350, %v1329, 0.0
    %v1346 = vsel %vm351, %v1341, 0.0
    %v1347 = vsel %vm350, %v1330, 0.0
    %v1348 = vsel %vm351, %v1342, 0.0
    %v1349 = vsel %vm350, %v1331, 0.0
    %v1350 = vsel %vm351, %v1343, 0.0
    %v1351 = vsel %vm350, %v1332, 0.0
    %v1352 = vsel %vm351, %v1344, 0.0
    %s1353 = sld [smem:[#allocation10 + $0x14]]
    %v1354 = vstv %s1353
    %v1355 = vmul.f32 %v1354, %v1345
    %v1356 = vmul.f32 %v1354, %v1346
    %v1357 = vadd.f32 %v1311, %v1355
    %v1358 = vadd.f32 %v1312, %v1356
    %s1359 = sld [smem:[#allocation10 + $0x15]]
    %v1360 = vstv %s1359
    %v1361 = vmul.f32 %v1360, %v1347
    %v1362 = vmul.f32 %v1360, %v1348
    %v1363 = vadd.f32 %v1357, %v1361
    %v1364 = vadd.f32 %v1358, %v1362
    %s1365 = sld [smem:[#allocation10 + $0x16]]
    %v1366 = vstv %s1365
    %v1367 = vmul.f32 %v1366, %v1349
    %v1368 = vmul.f32 %v1366, %v1350
    %v1369 = vadd.f32 %v1363, %v1367
    %v1370 = vadd.f32 %v1364, %v1368
    %s1371 = sld [smem:[#allocation10 + $0x17]]
    %v1372 = vstv %s1371
    %v1373 = vmul.f32 %v1372, %v1351
    %v1374 = vmul.f32 %v1372, %v1352
    %v1375 = vadd.f32 %v1369, %v1373
    %v1376 = vadd.f32 %v1370, %v1374
    %1377 = vrot.lane.b32.xlu0 %v1015, 113
    %v1378 = vpop.permute.xlu0 %1377
    %1379 = vrot.lane.b32.xlu0 %v1016, 113
    %v1380 = vpop.permute.xlu0 %1379
    %1381 = vrot.lane.b32.xlu0 %v1021, 113
    %v1382 = vpop.permute.xlu0 %1381
    %1383 = vrot.lane.b32.xlu0 %v1022, 113
    %v1384 = vpop.permute.xlu0 %1383
    %1385 = vrot.lane.b32.xlu0 %v1027, 113
    %v1386 = vpop.permute.xlu0 %1385
    %1387 = vrot.lane.b32.xlu0 %v1028, 113
    %v1388 = vpop.permute.xlu0 %1387
    %1389 = vrot.lane.b32.xlu0 %v1033, 113
    %v1390 = vpop.permute.xlu0 %1389
    %1391 = vrot.lane.b32.xlu0 %v1034, 113
    %v1392 = vpop.permute.xlu0 %1391
    %v1393 = vsel %vm720, %v1378, %v1380
    %v1394 = vsel %vm720, %v1382, %v1384
    %v1395 = vsel %vm720, %v1386, %v1388
    %v1396 = vsel %vm720, %v1390, %v1392
    %v1405 = vsel %vm720, %v1380, 0.0
    %v1406 = vsel %vm720, %v1384, 0.0
    %v1407 = vsel %vm720, %v1388, 0.0
    %v1408 = vsel %vm720, %v1392, 0.0
    %v1409 = vsel %vm154, %v1393, 0.0
    %v1410 = vsel %vm155, %v1405, 0.0
    %v1411 = vsel %vm154, %v1394, 0.0
    %v1412 = vsel %vm155, %v1406, 0.0
    %v1413 = vsel %vm154, %v1395, 0.0
    %v1414 = vsel %vm155, %v1407, 0.0
    %v1415 = vsel %vm154, %v1396, 0.0
    %v1416 = vsel %vm155, %v1408, 0.0
    %s1417 = sld [smem:[#allocation10 + $0x18]]
    %v1418 = vstv %s1417
    %v1419 = vmul.f32 %v1418, %v1409
    %v1420 = vmul.f32 %v1418, %v1410
    %v1421 = vadd.f32 %v1375, %v1419
    %v1422 = vadd.f32 %v1376, %v1420
    %s1423 = sld [smem:[#allocation10 + $0x19]]
    %v1424 = vstv %s1423
    %v1425 = vmul.f32 %v1424, %v1411
    %v1426 = vmul.f32 %v1424, %v1412
    %v1427 = vadd.f32 %v1421, %v1425
    %v1428 = vadd.f32 %v1422, %v1426
    %s1429 = sld [smem:[#allocation10 + $0x1a]]
    %v1430 = vstv %s1429
    %v1431 = vmul.f32 %v1430, %v1413
    %v1432 = vmul.f32 %v1430, %v1414
    %v1433 = vadd.f32 %v1427, %v1431
    %v1434 = vadd.f32 %v1428, %v1432
    %s1435 = sld [smem:[#allocation10 + $0x1b]]
    %v1436 = vstv %s1435
    %v1437 = vmul.f32 %v1436, %v1415
    %v1438 = vmul.f32 %v1436, %v1416
    %v1439 = vadd.f32 %v1433, %v1437
    %v1440 = vadd.f32 %v1434, %v1438
    %1441 = vrot.lane.b32.xlu0 %v1015, 112
    %v1442 = vpop.permute.xlu0 %1441
    %1443 = vrot.lane.b32.xlu0 %v1016, 112
    %v1444 = vpop.permute.xlu0 %1443
    %1445 = vrot.lane.b32.xlu0 %v1021, 112
    %v1446 = vpop.permute.xlu0 %1445
    %1447 = vrot.lane.b32.xlu0 %v1022, 112
    %v1448 = vpop.permute.xlu0 %1447
    %1449 = vrot.lane.b32.xlu0 %v1027, 112
    %v1450 = vpop.permute.xlu0 %1449
    %1451 = vrot.lane.b32.xlu0 %v1028, 112
    %v1452 = vpop.permute.xlu0 %1451
    %1453 = vrot.lane.b32.xlu0 %v1033, 112
    %v1454 = vpop.permute.xlu0 %1453
    %1455 = vrot.lane.b32.xlu0 %v1034, 112
    %v1456 = vpop.permute.xlu0 %1455
    %v1457 = vsel %vm823, %v1442, %v1444
    %v1458 = vsel %vm823, %v1446, %v1448
    %v1459 = vsel %vm823, %v1450, %v1452
    %v1460 = vsel %vm823, %v1454, %v1456
    %v1469 = vsel %vm823, %v1444, 0.0
    %v1470 = vsel %vm823, %v1448, 0.0
    %v1471 = vsel %vm823, %v1452, 0.0
    %v1472 = vsel %vm823, %v1456, 0.0
    %s1473 = sld [smem:[#allocation10 + $0x1c]]
    %v1474 = vstv %s1473
    %v1475 = vmul.f32 %v1474, %v1457
    %v1476 = vmul.f32 %v1474, %v1469
    %v1477 = vadd.f32 %v1439, %v1475
    %v1478 = vadd.f32 %v1440, %v1476
    %s1479 = sld [smem:[#allocation10 + $0x1d]]
    %v1480 = vstv %s1479
    %v1481 = vmul.f32 %v1480, %v1458
    %v1482 = vmul.f32 %v1480, %v1470
    %v1483 = vadd.f32 %v1477, %v1481
    %v1484 = vadd.f32 %v1478, %v1482
    %s1485 = sld [smem:[#allocation10 + $0x1e]]
    %v1486 = vstv %s1485
    %v1487 = vmul.f32 %v1486, %v1459
    %v1488 = vmul.f32 %v1486, %v1471
    %v1489 = vadd.f32 %v1483, %v1487
    %v1490 = vadd.f32 %v1484, %v1488
    %s1491 = sld [smem:[#allocation10 + $0x1f]]
    %v1492 = vstv %s1491
    %v1493 = vmul.f32 %v1492, %v1460
    %v1494 = vmul.f32 %v1492, %v1472
    %v1495 = vadd.f32 %v1489, %v1493
    %v1496 = vadd.f32 %v1490, %v1494
    %1497 = vrot.lane.b32.xlu0 %v1015, 111
    %v1498 = vpop.permute.xlu0 %1497
    %1499 = vrot.lane.b32.xlu0 %v1016, 111
    %v1500 = vpop.permute.xlu0 %1499
    %1501 = vrot.lane.b32.xlu0 %v1021, 111
    %v1502 = vpop.permute.xlu0 %1501
    %1503 = vrot.lane.b32.xlu0 %v1022, 111
    %v1504 = vpop.permute.xlu0 %1503
    %1505 = vrot.lane.b32.xlu0 %v1027, 111
    %v1506 = vpop.permute.xlu0 %1505
    %1507 = vrot.lane.b32.xlu0 %v1028, 111
    %v1508 = vpop.permute.xlu0 %1507
    %1509 = vrot.lane.b32.xlu0 %v1033, 111
    %v1510 = vpop.permute.xlu0 %1509
    %1511 = vrot.lane.b32.xlu0 %v1034, 111
    %v1512 = vpop.permute.xlu0 %1511
    %v1513 = vsel %vm920, %v1498, %v1500
    %v1514 = vsel %vm920, %v1502, %v1504
    %v1515 = vsel %vm920, %v1506, %v1508
    %v1516 = vsel %vm920, %v1510, %v1512
    %v1525 = vsel %vm920, %v1500, 0.0
    %v1526 = vsel %vm920, %v1504, 0.0
    %v1527 = vsel %vm920, %v1508, 0.0
    %v1528 = vsel %vm920, %v1512, 0.0
    %v1529 = vsel %vm350, %v1513, 0.0
    %v1530 = vsel %vm351, %v1525, 0.0
    %v1531 = vsel %vm350, %v1514, 0.0
    %v1532 = vsel %vm351, %v1526, 0.0
    %v1533 = vsel %vm350, %v1515, 0.0
    %v1534 = vsel %vm351, %v1527, 0.0
    %v1535 = vsel %vm350, %v1516, 0.0
    %v1536 = vsel %vm351, %v1528, 0.0
    %s1537 = sld [smem:[#allocation10 + $0x20]]
    %v1538 = vstv %s1537
    %v1539 = vmul.f32 %v1538, %v1529
    %v1540 = vmul.f32 %v1538, %v1530
    %v1541 = vadd.f32 %v1495, %v1539
    %v1542 = vadd.f32 %v1496, %v1540
    %s1543 = sld [smem:[#allocation10 + $0x21]]
    %v1544 = vstv %s1543
    %v1545 = vmul.f32 %v1544, %v1531
    %v1546 = vmul.f32 %v1544, %v1532
    %v1547 = vadd.f32 %v1541, %v1545
    %v1548 = vadd.f32 %v1542, %v1546
    %s1549 = sld [smem:[#allocation10 + $0x22]]
    %v1550 = vstv %s1549
    %v1551 = vmul.f32 %v1550, %v1533
    %v1552 = vmul.f32 %v1550, %v1534
    %v1553 = vadd.f32 %v1547, %v1551
    %v1554 = vadd.f32 %v1548, %v1552
    %s1555 = sld [smem:[#allocation10 + $0x23]]
    %v1556 = vstv %s1555
    %v1557 = vmul.f32 %v1556, %v1535
    %v1558 = vmul.f32 %v1556, %v1536
    %v1559 = vadd.f32 %v1553, %v1557
    %v1560 = vadd.f32 %v1554, %v1558
    %s1561 = sld [smem:[#allocation2]]
    %v1562 = vstv %s1561
    %v1563 = vadd.f32 %v1559, %v1562
    %v1564 = vadd.f32 %v1560, %v1562
    %v1565 = vmax.f32 %v1563, 0.0
    %v1566 = vmax.f32 %v1564, 0.0
    %v1567 = vmin.f32 %v1565, %v1566
    %1568 = vmin.xlane.f32.xlu0 %v1567
    %v1569 = vpop.xlane.xlu0 %1568
    %v1570 = vmax.f32 %v1565, %v1566
    %1571 = vmax.xlane.f32.xlu0 %v1570
    %v1572 = vpop.xlane.xlu0 %1571
    %v1573 = vsub.f32 %v1565, %v1569
    %v1574 = vsub.f32 %v1566, %v1569
    %v1575 = vsub.f32 %v1572, %v1569
    %v1576 = vadd.f32 %v1575, 1e-08
    %v1577 = vrcp.pop %v1576
    %v1578 = vmul.f32 %v1573, %v1577
    %v1579 = vmul.f32 %v1574, %v1577
    %1580 = vst [vmem:[#allocation11] sm:$0xff] %v1578
    %1581 = vst [vmem:[#allocation11 + $0x8] sm:$0xff] %v1579
    // Predicated region
    $region38: #{tpu_custom_call.1} parent=1 // pred_check
      _
    $region39: #{tpu_custom_call.1} parent=1 // pred_check_branch
      %1583 = sbr.rel (0) target = $region41
    $region40: #{tpu_custom_call.1} parent=1 // pred_region
      %s1585 = ssub.s32 256, 256
      %1586 = vsyncadd [#allocation5], %s1585
      %s1588 = sshll.u32 [#allocation11], 4
      %s1589 = int_to_ptr.vmem [resolvable:$true] %s1588
      %1591 = dma.vmem_to_hbm [thread:$0]  %s1589, 256, %s5, [#allocation5]
    $region41: #{tpu_custom_call.1} parent=1 // pred_fallthru
      _
    // Predicated region
    $region42: #{tpu_custom_call.1} parent=1 // pred_check
      _
    $region43: #{tpu_custom_call.1} parent=1 // pred_check_branch
      %1593 = sbr.rel (0) target = $region45
    $region44: #{tpu_custom_call.1} parent=1 // pred_region
      %1594 = dma.done [#allocation5], 256
    $region45: #{tpu_custom_call.1} parent=1 // pred_fallthru
      _
    %1595 = vsyncpa [#allocation4], 1
    %1596 = vsyncpa [#allocation5], 1
    %1597 = vsyncpa [#allocation6], 1
    %1598 = vsyncpa [#allocation9], 1

</llo_original>
